<compile_context>
chip_gen: v6e
topology: v6e:2x2x1
jax: 0.10.0
libtpu: 0.0.40
codegen_flags: <defaults>
</compile_context>

<pallas_src>
import math

import jax
import jax.numpy as jnp
from jax.experimental import pallas as pl
from jax.experimental.pallas import tpu as pltpu


def _round_up(x, m):
    return ((x + m - 1) // m) * m


def lipschitz_linear_kernel(x_ref, w_ref, b_ref, c_ref, o_ref, acc_ref, rs_ref):
    k = pl.program_id(2)
    nk = pl.num_programs(2)

    @pl.when(k == 0)
    def _init():
        acc_ref[...] = jnp.zeros_like(acc_ref)
        rs_ref[...] = jnp.zeros_like(rs_ref)

    x = x_ref[...]                      # (tm, tk), native dtype
    w = w_ref[...]                      # (tn, tk), native dtype (Dout-major, no transpose)

    # Contract Din of x against Din of W -> (tm, tn); MXU, f32 accumulation.
    dn = (((1,), (1,)), ((), ()))
    acc_ref[...] += jax.lax.dot_general(
        x, w, dimension_numbers=dn,
        preferred_element_type=jnp.float32,
        precision=jax.lax.Precision.HIGHEST)

    # Partial |W| row-sums for this K tile, produced directly in lane-dense
    # (1, tn) layout by contracting a ones-row against |W| on the MXU
    # (avoids a (tn,1)->(1,tn) relayout at finalize time).
    ones_row = jnp.ones((1, w.shape[1]), dtype=w.dtype)
    rs_ref[...] += jax.lax.dot_general(
        ones_row, jnp.abs(w), dimension_numbers=dn,
        preferred_element_type=jnp.float32,
        precision=jax.lax.Precision.HIGHEST)

    @pl.when(k == nk - 1)
    def _finalize():
        rs = rs_ref[...]                                   # (1, tn) f32, full row sums
        c_val = c_ref[0, 0]                                # f32 scalar from SMEM
        cb = jnp.full_like(rs, c_val)
        # softplus with torch's default threshold=20 (returns c for c > 20)
        lipc = jnp.where(cb > 20.0, cb, jnp.log(1.0 + jnp.exp(cb)))
        scale = jnp.minimum(lipc / jnp.maximum(rs, 1e-6), 1.0)      # (1, tn)
        b = b_ref[...].astype(jnp.float32)                 # (1, tn)
        # Apply per-output-column Lipschitz scale to the result, then bias.
        o_ref[...] = (acc_ref[...] * scale + b).astype(o_ref.dtype)


def lipschitz_linear(x, weight, bias, c, *, tm=256, tn=256, tk=1024):
    B, Din = x.shape
    Dout, Din2 = weight.shape
    assert Din == Din2
    out_dtype = x.dtype

    # Clamp tile sizes to the (8, 128)-aligned problem dims.
    tm = min(tm, _round_up(B, 8))
    tn = min(tn, _round_up(Dout, 128))
    tk = min(tk, _round_up(Din, 128))
    Mp, Np, Kp = _round_up(B, tm), _round_up(Dout, tn), _round_up(Din, tk)

    # Zero-padding is exact: padded Din columns contribute 0 to matmul and
    # row-sums; padded Dout rows/bias are sliced off below.
    xp = x if (Mp == B and Kp == Din) else jnp.pad(x, ((0, Mp - B), (0, Kp - Din)))
    wp = weight if (Np == Dout and Kp == Din) else jnp.pad(
        weight, ((0, Np - Dout), (0, Kp - Din)))
    bp = bias.reshape(1, Dout)
    if Np != Dout:
        bp = jnp.pad(bp, ((0, 0), (0, Np - Dout)))
    c2 = jnp.asarray(c, jnp.float32).reshape(1, 1)

    grid = (Mp // tm, Np // tn, Kp // tk)

    # VMEM budget: double-buffered x/W/bias tiles + double-buffered output +
    # f32 accumulator/row-sum scratch. Cap below v7x's 64 MiB physical VMEM.
    itemsize = jnp.dtype(x.dtype).itemsize
    est = (2 * (tm * tk + tn * tk + tn) * itemsize
           + 2 * tm * tn * jnp.dtype(out_dtype).itemsize
           + (tm * tn + tn) * 4)
    vmem_limit = int(min(max(4 * est, 32 * 1024 * 1024), 48 * 1024 * 1024))

    grid_spec = pltpu.PrefetchScalarGridSpec(
        num_scalar_prefetch=0,
        grid=grid,
        in_specs=[
            pl.BlockSpec((tm, tk), lambda i, j, k: (i, k)),   # x
            pl.BlockSpec((tn, tk), lambda i, j, k: (j, k)),   # W (native layout)
            pl.BlockSpec((1, tn), lambda i, j, k: (0, j)),    # bias
            pl.BlockSpec(memory_space=pltpu.MemorySpace.SMEM),  # c (scalar)
        ],
        out_specs=pl.BlockSpec((tm, tn), lambda i, j, k: (i, j)),
        scratch_shapes=[
            pltpu.VMEM((tm, tn), jnp.float32),   # matmul accumulator
            pltpu.VMEM((1, tn), jnp.float32),    # |W| row-sum accumulator
        ],
    )

    out = pl.pallas_call(
        lipschitz_linear_kernel,
        out_shape=jax.ShapeDtypeStruct((Mp, Np), out_dtype),
        grid_spec=grid_spec,
        compiler_params=pltpu.CompilerParams(
            dimension_semantics=("parallel", "parallel", "arbitrary"),
            vmem_limit_bytes=vmem_limit,
        ),
    )(xp, wp, bp, c2)

    if Mp != B or Np != Dout:
        out = out[:B, :Dout]
    return out


def reference_lipschitz_linear(x, weight, bias, c):
    c = jnp.asarray(c, jnp.float32)
    lipc = jnp.where(c > 20.0, c, jnp.log1p(jnp.exp(c)))            # softplus, threshold=20
    row = jnp.abs(weight).sum(axis=1)
    scale = jnp.minimum(lipc / jnp.maximum(row, 1e-6), 1.0)
    out = jax.lax.dot_general(
        x, weight * scale[:, None],
        dimension_numbers=(((1,), (1,)), ((), ())),
        preferred_element_type=jnp.float32,
        precision=jax.lax.Precision.HIGHEST)
    return (out + bias).astype(x.dtype)


def init_params(key, in_features, out_features, init="abs_row_sum"):
    stdv = 1.0 / math.sqrt(in_features)
    kw, kb = jax.random.split(key)
    weight = jax.random.uniform(
        kw, (out_features, in_features), jnp.float32, minval=-stdv, maxval=stdv)
    bias = jax.random.uniform(
        kb, (out_features,), jnp.float32, minval=-stdv, maxval=stdv)
    if init == "one":
        c = jnp.array([1.0], jnp.float32)
    elif init == "abs_row_sum":
        c = jnp.abs(weight).sum(axis=1).max().reshape(1)
    else:
        raise ValueError(f"Invalid init method {init}")
    return weight, bias, c


if __name__ == "__main__":
    key = jax.random.PRNGKey(0)
    k1, k2, k3, k4 = jax.random.split(key, 4)

    # Test 1: module-sized small problem (single grid step, padded to 128 lanes).
    batch, in_features, out_features = 8, 32, 32
    weight, bias, c = init_params(k1, in_features, out_features)
    x = jax.random.normal(k2, (batch, in_features), jnp.float32)
    out = jax.block_until_ready(lipschitz_linear(x, weight, bias, c))
    ref = reference_lipschitz_linear(x, weight, bias, c)
    assert out.shape == (batch, out_features)
    assert jnp.allclose(out, ref, atol=1e-4, rtol=1e-4), "mismatch vs reference (small)"

    # Test 2: exercises the K-accumulation and N tiling (grid = (1, 2, 3)).
    b2, din2, dout2 = 8, 384, 256
    weight2, bias2, c2 = init_params(k3, din2, dout2)
    x2 = jax.random.normal(k4, (b2, din2), jnp.float32)
    out2 = jax.block_until_ready(lipschitz_linear(x2, weight2, bias2, c2, tn=128, tk=128))
    ref2 = reference_lipschitz_linear(x2, weight2, bias2, c2)
    assert out2.shape == (b2, dout2)
    assert jnp.allclose(out2, ref2, atol=1e-4, rtol=1e-4), "mismatch vs reference (tiled)"

    print("KERNEL_OK")
</pallas_src>

<mosaic_0001>
module attributes {stable_mosaic.version = 11 : i64} {
  func.func @lipschitz_linear_kernel(%arg0: i32, %arg1: i32, %arg2: i32, %arg3: memref<8x128xf32, #tpu.memory_space<vmem>>, %arg4: memref<128x128xf32, #tpu.memory_space<vmem>>, %arg5: memref<1x128xf32, #tpu.memory_space<vmem>>, %arg6: memref<1x1xf32, #tpu.memory_space<smem>>, %arg7: memref<8x128xf32, #tpu.memory_space<vmem>>, %arg8: memref<8x128xf32, #tpu.memory_space<vmem>>, %arg9: memref<1x128xf32, #tpu.memory_space<vmem>>) attributes {dimension_semantics = [#tpu.dimension_semantics<parallel>, #tpu.dimension_semantics<parallel>, #tpu.dimension_semantics<arbitrary>], iteration_bounds = array<i64: 1, 1, 1>, scalar_prefetch = 0 : i64, scratch_operands = 2 : i64, tpu.core_type = #tpu.core_type<tc>, window_params = [{transform_indices = @transform_0, window_bounds = array<i64: 8, 128>}, {transform_indices = @transform_1, window_bounds = array<i64: 128, 128>}, {transform_indices = @transform_2, window_bounds = array<i64: 1, 128>}, {transform_indices = @transform_3, window_bounds = array<i64: 1, 1>}, {transform_indices = @transform_4, window_bounds = array<i64: 8, 128>}]} {
    %c0_i32 = arith.constant 0 : i32
    %0 = arith.cmpi eq, %arg2, %c0_i32 : i32
    %1 = arith.extui %0 : i1 to i32
    %c0_i32_0 = arith.constant 0 : i32
    %2 = arith.cmpi ne, %1, %c0_i32_0 : i32
    scf.if %2 {
      %cst_16 = arith.constant 0.000000e+00 : f32
      %18 = vector.broadcast %cst_16 : f32 to vector<8x128xf32>
      %c0_17 = arith.constant 0 : index
      %c0_18 = arith.constant 0 : index
      %19 = vector.load %arg8[%c0_17, %c0_18] : memref<8x128xf32, #tpu.memory_space<vmem>>, vector<8x128xf32>
      tpu.vector_store %arg8[%c0_17, %c0_18], %18 {strides = array<i32>} : memref<8x128xf32, #tpu.memory_space<vmem>>, vector<8x128xf32>,
      %cst_19 = arith.constant 0.000000e+00 : f32
      %20 = vector.broadcast %cst_19 : f32 to vector<1x128xf32>
      %c0_20 = arith.constant 0 : index
      %c0_21 = arith.constant 0 : index
      %21 = vector.load %arg9[%c0_20, %c0_21] : memref<1x128xf32, #tpu.memory_space<vmem>>, vector<1x128xf32>
      tpu.vector_store %arg9[%c0_20, %c0_21], %20 {strides = array<i32>} : memref<1x128xf32, #tpu.memory_space<vmem>>, vector<1x128xf32>,
    } else {
    }
    %c0 = arith.constant 0 : index
    %c0_1 = arith.constant 0 : index
    %3 = vector.load %arg3[%c0, %c0_1] : memref<8x128xf32, #tpu.memory_space<vmem>>, vector<8x128xf32>
    %c0_2 = arith.constant 0 : index
    %c0_3 = arith.constant 0 : index
    %4 = vector.load %arg4[%c0_2, %c0_3] : memref<128x128xf32, #tpu.memory_space<vmem>>, vector<128x128xf32>
    %c0_4 = arith.constant 0 : index
    %c0_5 = arith.constant 0 : index
    %5 = vector.load %arg8[%c0_4, %c0_5] : memref<8x128xf32, #tpu.memory_space<vmem>>, vector<8x128xf32>
    %cst = arith.constant dense<0.000000e+00> : vector<8x128xf32>
    %6 = tpu.matmul %3, %4, %cst {dimension_numbers = #tpu.dot_dimension_numbers<[1], [1], [0], [0], [0, 0, 1, 0], [], []>, precision = #tpu.contract_precision<fp32>} : vector<8x128xf32>, vector<128x128xf32>, vector<8x128xf32> -> vector<8x128xf32>
    %7 = arith.addf %5, %6 : vector<8x128xf32>
    %c0_6 = arith.constant 0 : index
    %c0_7 = arith.constant 0 : index
    %8 = vector.load %arg8[%c0_6, %c0_7] : memref<8x128xf32, #tpu.memory_space<vmem>>, vector<8x128xf32>
    tpu.vector_store %arg8[%c0_6, %c0_7], %7 {strides = array<i32>} : memref<8x128xf32, #tpu.memory_space<vmem>>, vector<8x128xf32>,
    %cst_8 = arith.constant 1.000000e+00 : f32
    %9 = vector.broadcast %cst_8 : f32 to vector<1x128xf32>
    %c0_9 = arith.constant 0 : index
    %c0_10 = arith.constant 0 : index
    %10 = vector.load %arg9[%c0_9, %c0_10] : memref<1x128xf32, #tpu.memory_space<vmem>>, vector<1x128xf32>
    %11 = math.absf %4 : vector<128x128xf32>
    %cst_11 = arith.constant dense<0.000000e+00> : vector<1x128xf32>
    %12 = tpu.matmul %9, %11, %cst_11 {dimension_numbers = #tpu.dot_dimension_numbers<[1], [1], [0], [0], [0, 0, 1, 0], [], []>, precision = #tpu.contract_precision<fp32>} : vector<1x128xf32>, vector<128x128xf32>, vector<1x128xf32> -> vector<1x128xf32>
    %13 = arith.addf %10, %12 : vector<1x128xf32>
    %c0_12 = arith.constant 0 : index
    %c0_13 = arith.constant 0 : index
    %14 = vector.load %arg9[%c0_12, %c0_13] : memref<1x128xf32, #tpu.memory_space<vmem>>, vector<1x128xf32>
    tpu.vector_store %arg9[%c0_12, %c0_13], %13 {strides = array<i32>} : memref<1x128xf32, #tpu.memory_space<vmem>>, vector<1x128xf32>,
    %c0_i32_14 = arith.constant 0 : i32
    %15 = arith.cmpi eq, %arg2, %c0_i32_14 : i32
    %16 = arith.extui %15 : i1 to i32
    %c0_i32_15 = arith.constant 0 : i32
    %17 = arith.cmpi ne, %16, %c0_i32_15 : i32
    scf.if %17 {
      %c0_16 = arith.constant 0 : index
      %c0_17 = arith.constant 0 : index
      %18 = vector.load %arg9[%c0_16, %c0_17] : memref<1x128xf32, #tpu.memory_space<vmem>>, vector<1x128xf32>
      %c0_18 = arith.constant 0 : index
      %c0_19 = arith.constant 0 : index
      %19 = memref.load %arg6[%c0_18, %c0_19] : memref<1x1xf32, #tpu.memory_space<smem>>
      %20 = vector.broadcast %19 : f32 to vector<1x128xf32>
      %cst_20 = arith.constant 2.000000e+01 : f32
      %21 = vector.broadcast %cst_20 : f32 to vector<1x128xf32>
      %22 = arith.cmpf ogt, %20, %21 : vector<1x128xf32>
      %23 = math.exp %20 : vector<1x128xf32>
      %cst_21 = arith.constant 1.000000e+00 : f32
      %24 = vector.broadcast %cst_21 : f32 to vector<1x128xf32>
      %25 = arith.addf %24, %23 : vector<1x128xf32>
      %26 = math.log %25 : vector<1x128xf32>
      %27 = arith.select %22, %20, %26 : vector<1x128xi1>, vector<1x128xf32>
      %cst_22 = arith.constant 9.99999997E-7 : f32
      %28 = vector.broadcast %cst_22 : f32 to vector<1x128xf32>
      %29 = arith.maximumf %18, %28 : vector<1x128xf32>
      %30 = arith.divf %27, %29 : vector<1x128xf32>
      %cst_23 = arith.constant 1.000000e+00 : f32
      %31 = vector.broadcast %cst_23 : f32 to vector<1x128xf32>
      %32 = arith.minimumf %30, %31 : vector<1x128xf32>
      %c0_24 = arith.constant 0 : index
      %c0_25 = arith.constant 0 : index
      %33 = vector.load %arg5[%c0_24, %c0_25] : memref<1x128xf32, #tpu.memory_space<vmem>>, vector<1x128xf32>
      %c0_26 = arith.constant 0 : index
      %c0_27 = arith.constant 0 : index
      %34 = vector.load %arg8[%c0_26, %c0_27] : memref<8x128xf32, #tpu.memory_space<vmem>>, vector<8x128xf32>
      %35 = vector.broadcast %32 : vector<1x128xf32> to vector<8x128xf32>
      %36 = arith.mulf %34, %35 : vector<8x128xf32>
      %37 = vector.broadcast %33 : vector<1x128xf32> to vector<8x128xf32>
      %38 = arith.addf %36, %37 : vector<8x128xf32>
      %c0_28 = arith.constant 0 : index
      %c0_29 = arith.constant 0 : index
      %39 = vector.load %arg7[%c0_28, %c0_29] : memref<8x128xf32, #tpu.memory_space<vmem>>, vector<8x128xf32>
      tpu.vector_store %arg7[%c0_28, %c0_29], %38 {strides = array<i32>} : memref<8x128xf32, #tpu.memory_space<vmem>>, vector<8x128xf32>,
    } else {
    }
    return
  }
  func.func @transform_0(%arg0: i32, %arg1: i32, %arg2: i32) -> (i32, i32) {
    %c0_i32 = arith.constant 0 : i32
    return %arg0, %arg2 : i32, i32
  }
  func.func @transform_1(%arg0: i32, %arg1: i32, %arg2: i32) -> (i32, i32) {
    %c0_i32 = arith.constant 0 : i32
    return %arg1, %arg2 : i32, i32
  }
  func.func @transform_2(%arg0: i32, %arg1: i32, %arg2: i32) -> (i32, i32) {
    %c0_i32 = arith.constant 0 : i32
    %c0_i32_0 = arith.constant 0 : i32
    return %c0_i32, %arg1 : i32, i32
  }
  func.func @transform_3(%arg0: i32, %arg1: i32, %arg2: i32) -> (i32, i32) {
    %c0_i32 = arith.constant 0 : i32
    %c0_i32_0 = arith.constant 0 : i32
    %c0_i32_1 = arith.constant 0 : i32
    return %c0_i32, %c0_i32_0 : i32, i32
  }
  func.func @transform_4(%arg0: i32, %arg1: i32, %arg2: i32) -> (i32, i32) {
    %c0_i32 = arith.constant 0 : i32
    return %arg0, %arg1 : i32, i32
  }
}

</mosaic_0001>

<llo_original>
// kernel: tpu_custom_call.1
$region0: #{tpu_custom_call.1}
  #allocation0 [shape = 'u32[]', space=smem, size = 0x4, offset = 0x4, fixed_abs, tag = 'smem constant byte address 0x4 - core index']
  #allocation1 [shape = 'u32[144,128]{1,0:T(1,128)}', space=vmem, size = 0x12000, scoped, tag = 'internal scratch']
  #allocation2 [shape = 'f32[8,128]{1,0:T(8,128)}', space=vmem, size = 0x1000, scoped, tag = 'scratch operand']
  #allocation3 [shape = 'f32[1,128]{1,0:T(1,128)}', space=vmem, size = 0x200, scoped, tag = 'scratch operand']
  #allocation4 [shape = 'f32[1,1]{1,0:T(1,128)S(6)}', space=smem, size = 0x200, scoped, tag = 'scoped memory for tpu_custom_call.1']
  %s0 = inlined_call_operand.hbm [shape: f32[8,128], index: 0, kind: input, shape index: {}]
  %s1 = inlined_call_operand.hbm [shape: f32[128,128], index: 1, kind: input, shape index: {}]
  %s2 = inlined_call_operand.vmem [shape: f32[1,128], index: 2, kind: input, shape index: {}]
  %s3 = inlined_call_operand.<no memory space> [shape: f32[1,1], index: 3, kind: input, shape index: {}]
  %s4 = inlined_call_operand.hbm [shape: f32[8,128], index: 4, kind: output, shape index: {}]
  %s5 = sld [smem:[#allocation0]]
  $region42: #{tpu_custom_call.1} parent=0
    _
  %s7 = ssub.s32 1, %s5
  %s8 = scalar_select 0, %s7, %s5
  %9 = sst [smem:[#allocation4]] %s3
  $region1: #{tpu_custom_call.1} parent=0
    #allocation5 [shape = 'u8[4096]{0}', space=vmem, size = 0x1000, scoped, tag = 'input window, operand 0, single buffered']
    #allocation6 [shape = 's32[1]{0}', space=sflag, size = 0x4, scoped, tag = 'scoped memory for tpu_custom_call.1']
    #allocation7 [shape = 's32[1]{0}', space=sflag, size = 0x4, scoped, tag = 'scoped memory for tpu_custom_call.1']
    #allocation8 [shape = 'u8[65536]{0}', space=vmem, size = 0x10000, scoped, tag = 'input window, operand 1, single buffered']
    #allocation9 [shape = 's32[1]{0}', space=sflag, size = 0x4, scoped, tag = 'scoped memory for tpu_custom_call.1']
    #allocation10 [shape = 'u8[4096]{0}', space=vmem, size = 0x1000, scoped, tag = 'output window, operand 0, single buffered']
    %10 = vsyncpa [#allocation6], 0
    %11 = vsyncpa [#allocation9], 0
    %12 = vsyncpa [#allocation7], 0
    // Predicated region
    $region2: #{tpu_custom_call.1} parent=1 // pred_check
      _
    $region3: #{tpu_custom_call.1} parent=1 // pred_check_branch
      %14 = sbr.rel (0) target = $region5
    $region4: #{tpu_custom_call.1} parent=1 // pred_region
      %s16 = ssub.s32 128, 128
      %17 = vsyncadd [#allocation6], %s16
      %s19 = sshll.u32 [#allocation5], 4
      %s20 = int_to_ptr.vmem [resolvable:$true] %s19
      %22 = dma.hbm_to_vmem [thread:$0]  %s0, 128, %s20, [#allocation6]
    $region5: #{tpu_custom_call.1} parent=1 // pred_fallthru
      _
    // Predicated region
    $region6: #{tpu_custom_call.1} parent=1 // pred_check
      _
    $region7: #{tpu_custom_call.1} parent=1 // pred_check_branch
      %24 = sbr.rel (0) target = $region9
    $region8: #{tpu_custom_call.1} parent=1 // pred_region
      %s26 = ssub.s32 2048, 2048
      %27 = vsyncadd [#allocation9], %s26
      %s28 = sshll.u32 [#allocation8], 4
      %s29 = int_to_ptr.vmem [resolvable:$true] %s28
      %34 = dma.hbm_to_vmem [thread:$0]  %s1, 2048, %s29, [#allocation9], 128, 128, 8
    $region9: #{tpu_custom_call.1} parent=1 // pred_fallthru
      _
    // Predicated region
    $region10: #{tpu_custom_call.1} parent=1 // pred_check
      _
    $region11: #{tpu_custom_call.1} parent=1 // pred_check_branch
      %36 = sbr.rel (0) target = $region13
    $region12: #{tpu_custom_call.1} parent=1 // pred_region
      _
    $region13: #{tpu_custom_call.1} parent=1 // pred_fallthru
      _
    // Predicated region
    $region14: #{tpu_custom_call.1} parent=1 // pred_check
      _
    $region15: #{tpu_custom_call.1} parent=1 // pred_check_branch
      %38 = sbr.rel (0) target = $region17
    $region16: #{tpu_custom_call.1} parent=1 // pred_region
      _
    $region17: #{tpu_custom_call.1} parent=1 // pred_fallthru
      _
    // Predicated region
    $region18: #{tpu_custom_call.1} parent=1 // pred_check
      _
    $region19: #{tpu_custom_call.1} parent=1 // pred_check_branch
      %40 = sbr.rel (0) target = $region21
    $region20: #{tpu_custom_call.1} parent=1 // pred_region
      %41 = dma.done [#allocation6], 128
    $region21: #{tpu_custom_call.1} parent=1 // pred_fallthru
      _
    // Predicated region
    $region22: #{tpu_custom_call.1} parent=1 // pred_check
      _
    $region23: #{tpu_custom_call.1} parent=1 // pred_check_branch
      %43 = sbr.rel (0) target = $region25
    $region24: #{tpu_custom_call.1} parent=1 // pred_region
      %44 = dma.done [#allocation9], 2048
    $region25: #{tpu_custom_call.1} parent=1 // pred_fallthru
      _
    %p45 = scmp.eq.s32.totalorder 0, 0
    // Predicated region
    $region26: #{tpu_custom_call.1} parent=1 // pred_check
      %p46 = pneg %p45
    $region27: #{tpu_custom_call.1} parent=1 // pred_check_branch
      %48 = sbr.rel (%p46) target = $region29
    $region28: #{tpu_custom_call.1} parent=1 // pred_region
      %49 = vst [vmem:[#allocation2] sm:$0xff] 0.0
      %50 = vst [vmem:[#allocation3] sm:$0x1] 0.0
    $region29: #{tpu_custom_call.1} parent=1 // pred_fallthru
      _
    %v51 = vld [vmem:[#allocation5] sm:$0xff]
    %v52 = vld [vmem:[#allocation8] sm:$0xff]
    %v53 = vld [vmem:[#allocation8 + $0x8] sm:$0xff]
    %v54 = vld [vmem:[#allocation8 + $0x10] sm:$0xff]
    %v55 = vld [vmem:[#allocation8 + $0x18] sm:$0xff]
    %v56 = vld [vmem:[#allocation8 + $0x20] sm:$0xff]
    %v57 = vld [vmem:[#allocation8 + $0x28] sm:$0xff]
    %v58 = vld [vmem:[#allocation8 + $0x30] sm:$0xff]
    %v59 = vld [vmem:[#allocation8 + $0x38] sm:$0xff]
    %v60 = vld [vmem:[#allocation8 + $0x40] sm:$0xff]
    %v61 = vld [vmem:[#allocation8 + $0x48] sm:$0xff]
    %v62 = vld [vmem:[#allocation8 + $0x50] sm:$0xff]
    %v63 = vld [vmem:[#allocation8 + $0x58] sm:$0xff]
    %v64 = vld [vmem:[#allocation8 + $0x60] sm:$0xff]
    %v65 = vld [vmem:[#allocation8 + $0x68] sm:$0xff]
    %v66 = vld [vmem:[#allocation8 + $0x70] sm:$0xff]
    %v67 = vld [vmem:[#allocation8 + $0x78] sm:$0xff]
    %v68 = vld [vmem:[#allocation2] sm:$0xff]
    %69 = vmatprep.subr.mxu0 0.0
    %v70 = vand.u32 %v67, 4294901760
    %71 = vmatpush1.xpose.msra.mxu0 %v70
    %72 = vmatprep.subr.mxu0 0.0
    %v73 = vand.u32 %v66, 4294901760
    %74 = vmatpush1.xpose.msra.mxu0 %v73
    %75 = vmatprep.subr.mxu0 0.0
    %v76 = vand.u32 %v65, 4294901760
    %77 = vmatpush1.xpose.msra.mxu0 %v76
    %78 = vmatprep.subr.mxu0 0.0
    %v79 = vand.u32 %v64, 4294901760
    %80 = vmatpush1.xpose.msra.mxu0 %v79
    %81 = vmatprep.subr.mxu0 0.0
    %v82 = vand.u32 %v63, 4294901760
    %83 = vmatpush1.xpose.msra.mxu0 %v82
    %84 = vmatprep.subr.mxu0 0.0
    %v85 = vand.u32 %v62, 4294901760
    %86 = vmatpush1.xpose.msra.mxu0 %v85
    %87 = vmatprep.subr.mxu0 0.0
    %v88 = vand.u32 %v61, 4294901760
    %89 = vmatpush1.xpose.msra.mxu0 %v88
    %90 = vmatprep.subr.mxu0 0.0
    %v91 = vand.u32 %v60, 4294901760
    %92 = vmatpush1.xpose.msra.mxu0 %v91
    %93 = vmatprep.subr.mxu0 0.0
    %v94 = vand.u32 %v59, 4294901760
    %95 = vmatpush1.xpose.msra.mxu0 %v94
    %96 = vmatprep.subr.mxu0 0.0
    %v97 = vand.u32 %v58, 4294901760
    %98 = vmatpush1.xpose.msra.mxu0 %v97
    %99 = vmatprep.subr.mxu0 0.0
    %v100 = vand.u32 %v57, 4294901760
    %101 = vmatpush1.xpose.msra.mxu0 %v100
    %102 = vmatprep.subr.mxu0 0.0
    %v103 = vand.u32 %v56, 4294901760
    %104 = vmatpush1.xpose.msra.mxu0 %v103
    %105 = vmatprep.subr.mxu0 0.0
    %v106 = vand.u32 %v55, 4294901760
    %107 = vmatpush1.xpose.msra.mxu0 %v106
    %108 = vmatprep.subr.mxu0 0.0
    %v109 = vand.u32 %v54, 4294901760
    %110 = vmatpush1.xpose.msra.mxu0 %v109
    %111 = vmatprep.subr.mxu0 0.0
    %v112 = vand.u32 %v53, 4294901760
    %113 = vmatpush1.xpose.msra.mxu0 %v112
    %114 = vmatprep.subr.mxu0 0.0
    %v115 = vand.u32 %v52, 4294901760
    %116 = vmatpush1.xpose.msra.mxu0 %v115
    %117 = vmatprep.subr.mxu0 0.0
    %118 = vmatpush2.xpose.msra.mxu0 0.0
    %119 = vmatprep.subr.mxu0 0.0
    %120 = vmatpush2.xpose.msra.mxu0 0.0
    %121 = vmatprep.subr.mxu0 0.0
    %122 = vmatpush2.xpose.msra.mxu0 0.0
    %123 = vmatprep.subr.mxu0 0.0
    %124 = vmatpush2.xpose.msra.mxu0 0.0
    %125 = vmatprep.subr.mxu0 0.0
    %126 = vmatpush2.xpose.msra.mxu0 0.0
    %127 = vmatprep.subr.mxu0 0.0
    %128 = vmatpush2.xpose.msra.mxu0 0.0
    %129 = vmatprep.subr.mxu0 0.0
    %130 = vmatpush2.xpose.msra.mxu0 0.0
    %131 = vmatprep.subr.mxu0 0.0
    %132 = vmatpush2.xpose.msra.mxu0 0.0
    %133 = vmatprep.subr.mxu0 0.0
    %134 = vmatpush2.xpose.msra.mxu0 0.0
    %135 = vmatprep.subr.mxu0 0.0
    %136 = vmatpush2.xpose.msra.mxu0 0.0
    %137 = vmatprep.subr.mxu0 0.0
    %138 = vmatpush2.xpose.msra.mxu0 0.0
    %139 = vmatprep.subr.mxu0 0.0
    %140 = vmatpush2.xpose.msra.mxu0 0.0
    %141 = vmatprep.subr.mxu0 0.0
    %142 = vmatpush2.xpose.msra.mxu0 0.0
    %143 = vmatprep.subr.mxu0 0.0
    %144 = vmatpush2.xpose.msra.mxu0 0.0
    %145 = vmatprep.subr.mxu0 0.0
    %146 = vmatpush2.xpose.msra.mxu0 0.0
    %147 = vmatprep.subr.mxu0 0.0
    %148 = vmatpush2.xpose.msra.mxu0 0.0
    %149 = vmatprep.mubr.f32.mxu0 0.0
    %v150 = vand.u32 %v51, 4294901760
    %v151 = vsub.f32 %v51, %v150
    %v152 = vand.u32 %v151, 4294901760
    %v153 = vsub.f32 %v151, %v152
    %v154 = vand.u32 %v153, 4294901760
    %155 = vmatmul.mubr.f32.gmra.mxu0 %v154
    %v156 = vpop.f32.mrf.mxu0
    %v157 = vadd.f32 0.0, %v156
    %v158 = vpop.f32.mrf.mxu0
    %159 = vdwg.mxu0
    %160 = vmatprep.subr.mxu0 0.0
    %v161 = vand.u32 %v67, 4294901760
    %v162 = vsub.f32 %v67, %v161
    %v163 = vand.u32 %v162, 4294901760
    %v164 = vsub.f32 %v162, %v163
    %v165 = vand.u32 %v164, 4294901760
    %166 = vmatpush1.xpose.msra.mxu0 %v165
    %167 = vmatprep.subr.mxu0 0.0
    %v168 = vand.u32 %v66, 4294901760
    %v169 = vsub.f32 %v66, %v168
    %v170 = vand.u32 %v169, 4294901760
    %v171 = vsub.f32 %v169, %v170
    %v172 = vand.u32 %v171, 4294901760
    %173 = vmatpush1.xpose.msra.mxu0 %v172
    %174 = vmatprep.subr.mxu0 0.0
    %v175 = vand.u32 %v65, 4294901760
    %v176 = vsub.f32 %v65, %v175
    %v177 = vand.u32 %v176, 4294901760
    %v178 = vsub.f32 %v176, %v177
    %v179 = vand.u32 %v178, 4294901760
    %180 = vmatpush1.xpose.msra.mxu0 %v179
    %181 = vmatprep.subr.mxu0 0.0
    %v182 = vand.u32 %v64, 4294901760
    %v183 = vsub.f32 %v64, %v182
    %v184 = vand.u32 %v183, 4294901760
    %v185 = vsub.f32 %v183, %v184
    %v186 = vand.u32 %v185, 4294901760
    %187 = vmatpush1.xpose.msra.mxu0 %v186
    %188 = vmatprep.subr.mxu0 0.0
    %v189 = vand.u32 %v63, 4294901760
    %v190 = vsub.f32 %v63, %v189
    %v191 = vand.u32 %v190, 4294901760
    %v192 = vsub.f32 %v190, %v191
    %v193 = vand.u32 %v192, 4294901760
    %194 = vmatpush1.xpose.msra.mxu0 %v193
    %195 = vmatprep.subr.mxu0 0.0
    %v196 = vand.u32 %v62, 4294901760
    %v197 = vsub.f32 %v62, %v196
    %v198 = vand.u32 %v197, 4294901760
    %v199 = vsub.f32 %v197, %v198
    %v200 = vand.u32 %v199, 4294901760
    %201 = vmatpush1.xpose.msra.mxu0 %v200
    %202 = vmatprep.subr.mxu0 0.0
    %v203 = vand.u32 %v61, 4294901760
    %v204 = vsub.f32 %v61, %v203
    %v205 = vand.u32 %v204, 4294901760
    %v206 = vsub.f32 %v204, %v205
    %v207 = vand.u32 %v206, 4294901760
    %208 = vmatpush1.xpose.msra.mxu0 %v207
    %209 = vmatprep.subr.mxu0 0.0
    %v210 = vand.u32 %v60, 4294901760
    %v211 = vsub.f32 %v60, %v210
    %v212 = vand.u32 %v211, 4294901760
    %v213 = vsub.f32 %v211, %v212
    %v214 = vand.u32 %v213, 4294901760
    %215 = vmatpush1.xpose.msra.mxu0 %v214
    %216 = vmatprep.subr.mxu0 0.0
    %v217 = vand.u32 %v59, 4294901760
    %v218 = vsub.f32 %v59, %v217
    %v219 = vand.u32 %v218, 4294901760
    %v220 = vsub.f32 %v218, %v219
    %v221 = vand.u32 %v220, 4294901760
    %222 = vmatpush1.xpose.msra.mxu0 %v221
    %223 = vmatprep.subr.mxu0 0.0
    %v224 = vand.u32 %v58, 4294901760
    %v225 = vsub.f32 %v58, %v224
    %v226 = vand.u32 %v225, 4294901760
    %v227 = vsub.f32 %v225, %v226
    %v228 = vand.u32 %v227, 4294901760
    %229 = vmatpush1.xpose.msra.mxu0 %v228
    %230 = vmatprep.subr.mxu0 0.0
    %v231 = vand.u32 %v57, 4294901760
    %v232 = vsub.f32 %v57, %v231
    %v233 = vand.u32 %v232, 4294901760
    %v234 = vsub.f32 %v232, %v233
    %v235 = vand.u32 %v234, 4294901760
    %236 = vmatpush1.xpose.msra.mxu0 %v235
    %237 = vmatprep.subr.mxu0 0.0
    %v238 = vand.u32 %v56, 4294901760
    %v239 = vsub.f32 %v56, %v238
    %v240 = vand.u32 %v239, 4294901760
    %v241 = vsub.f32 %v239, %v240
    %v242 = vand.u32 %v241, 4294901760
    %243 = vmatpush1.xpose.msra.mxu0 %v242
    %244 = vmatprep.subr.mxu0 0.0
    %v245 = vand.u32 %v55, 4294901760
    %v246 = vsub.f32 %v55, %v245
    %v247 = vand.u32 %v246, 4294901760
    %v248 = vsub.f32 %v246, %v247
    %v249 = vand.u32 %v248, 4294901760
    %250 = vmatpush1.xpose.msra.mxu0 %v249
    %251 = vmatprep.subr.mxu0 0.0
    %v252 = vand.u32 %v54, 4294901760
    %v253 = vsub.f32 %v54, %v252
    %v254 = vand.u32 %v253, 4294901760
    %v255 = vsub.f32 %v253, %v254
    %v256 = vand.u32 %v255, 4294901760
    %257 = vmatpush1.xpose.msra.mxu0 %v256
    %258 = vmatprep.subr.mxu0 0.0
    %v259 = vand.u32 %v53, 4294901760
    %v260 = vsub.f32 %v53, %v259
    %v261 = vand.u32 %v260, 4294901760
    %v262 = vsub.f32 %v260, %v261
    %v263 = vand.u32 %v262, 4294901760
    %264 = vmatpush1.xpose.msra.mxu0 %v263
    %265 = vmatprep.subr.mxu0 0.0
    %v266 = vand.u32 %v52, 4294901760
    %v267 = vsub.f32 %v52, %v266
    %v268 = vand.u32 %v267, 4294901760
    %v269 = vsub.f32 %v267, %v268
    %v270 = vand.u32 %v269, 4294901760
    %271 = vmatpush1.xpose.msra.mxu0 %v270
    %272 = vmatprep.subr.mxu0 0.0
    %273 = vmatpush2.xpose.msra.mxu0 0.0
    %274 = vmatprep.subr.mxu0 0.0
    %275 = vmatpush2.xpose.msra.mxu0 0.0
    %276 = vmatprep.subr.mxu0 0.0
    %277 = vmatpush2.xpose.msra.mxu0 0.0
    %278 = vmatprep.subr.mxu0 0.0
    %279 = vmatpush2.xpose.msra.mxu0 0.0
    %280 = vmatprep.subr.mxu0 0.0
    %281 = vmatpush2.xpose.msra.mxu0 0.0
    %282 = vmatprep.subr.mxu0 0.0
    %283 = vmatpush2.xpose.msra.mxu0 0.0
    %284 = vmatprep.subr.mxu0 0.0
    %285 = vmatpush2.xpose.msra.mxu0 0.0
    %286 = vmatprep.subr.mxu0 0.0
    %287 = vmatpush2.xpose.msra.mxu0 0.0
    %288 = vmatprep.subr.mxu0 0.0
    %289 = vmatpush2.xpose.msra.mxu0 0.0
    %290 = vmatprep.subr.mxu0 0.0
    %291 = vmatpush2.xpose.msra.mxu0 0.0
    %292 = vmatprep.subr.mxu0 0.0
    %293 = vmatpush2.xpose.msra.mxu0 0.0
    %294 = vmatprep.subr.mxu0 0.0
    %295 = vmatpush2.xpose.msra.mxu0 0.0
    %296 = vmatprep.subr.mxu0 0.0
    %297 = vmatpush2.xpose.msra.mxu0 0.0
    %298 = vmatprep.subr.mxu0 0.0
    %299 = vmatpush2.xpose.msra.mxu0 0.0
    %300 = vmatprep.subr.mxu0 0.0
    %301 = vmatpush2.xpose.msra.mxu0 0.0
    %302 = vmatprep.subr.mxu0 0.0
    %303 = vmatpush2.xpose.msra.mxu0 0.0
    %304 = vmatprep.mubr.f32.mxu0 0.0
    %v305 = vand.u32 %v51, 4294901760
    %306 = vmatmul.mubr.f32.gmra.mxu0 %v305
    %v307 = vpop.f32.mrf.mxu0
    %v308 = vadd.f32 %v157, %v307
    %v309 = vpop.f32.mrf.mxu0
    %310 = vdwg.mxu0
    %311 = vmatprep.subr.mxu0 0.0
    %v312 = vand.u32 %v67, 4294901760
    %v313 = vsub.f32 %v67, %v312
    %314 = vmatpush1.xpose.msra.mxu0 %v313
    %315 = vmatprep.subr.mxu0 0.0
    %v316 = vand.u32 %v66, 4294901760
    %v317 = vsub.f32 %v66, %v316
    %318 = vmatpush1.xpose.msra.mxu0 %v317
    %319 = vmatprep.subr.mxu0 0.0
    %v320 = vand.u32 %v65, 4294901760
    %v321 = vsub.f32 %v65, %v320
    %322 = vmatpush1.xpose.msra.mxu0 %v321
    %323 = vmatprep.subr.mxu0 0.0
    %v324 = vand.u32 %v64, 4294901760
    %v325 = vsub.f32 %v64, %v324
    %326 = vmatpush1.xpose.msra.mxu0 %v325
    %327 = vmatprep.subr.mxu0 0.0
    %v328 = vand.u32 %v63, 4294901760
    %v329 = vsub.f32 %v63, %v328
    %330 = vmatpush1.xpose.msra.mxu0 %v329
    %331 = vmatprep.subr.mxu0 0.0
    %v332 = vand.u32 %v62, 4294901760
    %v333 = vsub.f32 %v62, %v332
    %334 = vmatpush1.xpose.msra.mxu0 %v333
    %335 = vmatprep.subr.mxu0 0.0
    %v336 = vand.u32 %v61, 4294901760
    %v337 = vsub.f32 %v61, %v336
    %338 = vmatpush1.xpose.msra.mxu0 %v337
    %339 = vmatprep.subr.mxu0 0.0
    %v340 = vand.u32 %v60, 4294901760
    %v341 = vsub.f32 %v60, %v340
    %342 = vmatpush1.xpose.msra.mxu0 %v341
    %343 = vmatprep.subr.mxu0 0.0
    %v344 = vand.u32 %v59, 4294901760
    %v345 = vsub.f32 %v59, %v344
    %346 = vmatpush1.xpose.msra.mxu0 %v345
    %347 = vmatprep.subr.mxu0 0.0
    %v348 = vand.u32 %v58, 4294901760
    %v349 = vsub.f32 %v58, %v348
    %350 = vmatpush1.xpose.msra.mxu0 %v349
    %351 = vmatprep.subr.mxu0 0.0
    %v352 = vand.u32 %v57, 4294901760
    %v353 = vsub.f32 %v57, %v352
    %354 = vmatpush1.xpose.msra.mxu0 %v353
    %355 = vmatprep.subr.mxu0 0.0
    %v356 = vand.u32 %v56, 4294901760
    %v357 = vsub.f32 %v56, %v356
    %358 = vmatpush1.xpose.msra.mxu0 %v357
    %359 = vmatprep.subr.mxu0 0.0
    %v360 = vand.u32 %v55, 4294901760
    %v361 = vsub.f32 %v55, %v360
    %362 = vmatpush1.xpose.msra.mxu0 %v361
    %363 = vmatprep.subr.mxu0 0.0
    %v364 = vand.u32 %v54, 4294901760
    %v365 = vsub.f32 %v54, %v364
    %366 = vmatpush1.xpose.msra.mxu0 %v365
    %367 = vmatprep.subr.mxu0 0.0
    %v368 = vand.u32 %v53, 4294901760
    %v369 = vsub.f32 %v53, %v368
    %370 = vmatpush1.xpose.msra.mxu0 %v369
    %371 = vmatprep.subr.mxu0 0.0
    %v372 = vand.u32 %v52, 4294901760
    %v373 = vsub.f32 %v52, %v372
    %374 = vmatpush1.xpose.msra.mxu0 %v373
    %375 = vmatprep.subr.mxu0 0.0
    %376 = vmatpush2.xpose.msra.mxu0 0.0
    %377 = vmatprep.subr.mxu0 0.0
    %378 = vmatpush2.xpose.msra.mxu0 0.0
    %379 = vmatprep.subr.mxu0 0.0
    %380 = vmatpush2.xpose.msra.mxu0 0.0
    %381 = vmatprep.subr.mxu0 0.0
    %382 = vmatpush2.xpose.msra.mxu0 0.0
    %383 = vmatprep.subr.mxu0 0.0
    %384 = vmatpush2.xpose.msra.mxu0 0.0
    %385 = vmatprep.subr.mxu0 0.0
    %386 = vmatpush2.xpose.msra.mxu0 0.0
    %387 = vmatprep.subr.mxu0 0.0
    %388 = vmatpush2.xpose.msra.mxu0 0.0
    %389 = vmatprep.subr.mxu0 0.0
    %390 = vmatpush2.xpose.msra.mxu0 0.0
    %391 = vmatprep.subr.mxu0 0.0
    %392 = vmatpush2.xpose.msra.mxu0 0.0
    %393 = vmatprep.subr.mxu0 0.0
    %394 = vmatpush2.xpose.msra.mxu0 0.0
    %395 = vmatprep.subr.mxu0 0.0
    %396 = vmatpush2.xpose.msra.mxu0 0.0
    %397 = vmatprep.subr.mxu0 0.0
    %398 = vmatpush2.xpose.msra.mxu0 0.0
    %399 = vmatprep.subr.mxu0 0.0
    %400 = vmatpush2.xpose.msra.mxu0 0.0
    %401 = vmatprep.subr.mxu0 0.0
    %402 = vmatpush2.xpose.msra.mxu0 0.0
    %403 = vmatprep.subr.mxu0 0.0
    %404 = vmatpush2.xpose.msra.mxu0 0.0
    %405 = vmatprep.subr.mxu0 0.0
    %406 = vmatpush2.xpose.msra.mxu0 0.0
    %407 = vmatprep.mubr.f32.mxu0 0.0
    %v408 = vand.u32 %v51, 4294901760
    %v409 = vsub.f32 %v51, %v408
    %410 = vmatmul.mubr.f32.gmra.mxu0 %v409
    %v411 = vpop.f32.mrf.mxu0
    %v412 = vadd.f32 %v308, %v411
    %v413 = vpop.f32.mrf.mxu0
    %414 = vdwg.mxu0
    %415 = vmatprep.subr.mxu0 0.0
    %v416 = vand.u32 %v67, 4294901760
    %417 = vmatpush1.xpose.msra.mxu0 %v416
    %418 = vmatprep.subr.mxu0 0.0
    %v419 = vand.u32 %v66, 4294901760
    %420 = vmatpush1.xpose.msra.mxu0 %v419
    %421 = vmatprep.subr.mxu0 0.0
    %v422 = vand.u32 %v65, 4294901760
    %423 = vmatpush1.xpose.msra.mxu0 %v422
    %424 = vmatprep.subr.mxu0 0.0
    %v425 = vand.u32 %v64, 4294901760
    %426 = vmatpush1.xpose.msra.mxu0 %v425
    %427 = vmatprep.subr.mxu0 0.0
    %v428 = vand.u32 %v63, 4294901760
    %429 = vmatpush1.xpose.msra.mxu0 %v428
    %430 = vmatprep.subr.mxu0 0.0
    %v431 = vand.u32 %v62, 4294901760
    %432 = vmatpush1.xpose.msra.mxu0 %v431
    %433 = vmatprep.subr.mxu0 0.0
    %v434 = vand.u32 %v61, 4294901760
    %435 = vmatpush1.xpose.msra.mxu0 %v434
    %436 = vmatprep.subr.mxu0 0.0
    %v437 = vand.u32 %v60, 4294901760
    %438 = vmatpush1.xpose.msra.mxu0 %v437
    %439 = vmatprep.subr.mxu0 0.0
    %v440 = vand.u32 %v59, 4294901760
    %441 = vmatpush1.xpose.msra.mxu0 %v440
    %442 = vmatprep.subr.mxu0 0.0
    %v443 = vand.u32 %v58, 4294901760
    %444 = vmatpush1.xpose.msra.mxu0 %v443
    %445 = vmatprep.subr.mxu0 0.0
    %v446 = vand.u32 %v57, 4294901760
    %447 = vmatpush1.xpose.msra.mxu0 %v446
    %448 = vmatprep.subr.mxu0 0.0
    %v449 = vand.u32 %v56, 4294901760
    %450 = vmatpush1.xpose.msra.mxu0 %v449
    %451 = vmatprep.subr.mxu0 0.0
    %v452 = vand.u32 %v55, 4294901760
    %453 = vmatpush1.xpose.msra.mxu0 %v452
    %454 = vmatprep.subr.mxu0 0.0
    %v455 = vand.u32 %v54, 4294901760
    %456 = vmatpush1.xpose.msra.mxu0 %v455
    %457 = vmatprep.subr.mxu0 0.0
    %v458 = vand.u32 %v53, 4294901760
    %459 = vmatpush1.xpose.msra.mxu0 %v458
    %460 = vmatprep.subr.mxu0 0.0
    %v461 = vand.u32 %v52, 4294901760
    %462 = vmatpush1.xpose.msra.mxu0 %v461
    %463 = vmatprep.subr.mxu0 0.0
    %464 = vmatpush2.xpose.msra.mxu0 0.0
    %465 = vmatprep.subr.mxu0 0.0
    %466 = vmatpush2.xpose.msra.mxu0 0.0
    %467 = vmatprep.subr.mxu0 0.0
    %468 = vmatpush2.xpose.msra.mxu0 0.0
    %469 = vmatprep.subr.mxu0 0.0
    %470 = vmatpush2.xpose.msra.mxu0 0.0
    %471 = vmatprep.subr.mxu0 0.0
    %472 = vmatpush2.xpose.msra.mxu0 0.0
    %473 = vmatprep.subr.mxu0 0.0
    %474 = vmatpush2.xpose.msra.mxu0 0.0
    %475 = vmatprep.subr.mxu0 0.0
    %476 = vmatpush2.xpose.msra.mxu0 0.0
    %477 = vmatprep.subr.mxu0 0.0
    %478 = vmatpush2.xpose.msra.mxu0 0.0
    %479 = vmatprep.subr.mxu0 0.0
    %480 = vmatpush2.xpose.msra.mxu0 0.0
    %481 = vmatprep.subr.mxu0 0.0
    %482 = vmatpush2.xpose.msra.mxu0 0.0
    %483 = vmatprep.subr.mxu0 0.0
    %484 = vmatpush2.xpose.msra.mxu0 0.0
    %485 = vmatprep.subr.mxu0 0.0
    %486 = vmatpush2.xpose.msra.mxu0 0.0
    %487 = vmatprep.subr.mxu0 0.0
    %488 = vmatpush2.xpose.msra.mxu0 0.0
    %489 = vmatprep.subr.mxu0 0.0
    %490 = vmatpush2.xpose.msra.mxu0 0.0
    %491 = vmatprep.subr.mxu0 0.0
    %492 = vmatpush2.xpose.msra.mxu0 0.0
    %493 = vmatprep.subr.mxu0 0.0
    %494 = vmatpush2.xpose.msra.mxu0 0.0
    %495 = vmatprep.mubr.f32.mxu0 0.0
    %v496 = vand.u32 %v51, 4294901760
    %v497 = vsub.f32 %v51, %v496
    %v498 = vand.u32 %v497, 4294901760
    %499 = vmatmul.mubr.f32.gmra.mxu0 %v498
    %v500 = vpop.f32.mrf.mxu0
    %v501 = vadd.f32 %v412, %v500
    %v502 = vpop.f32.mrf.mxu0
    %503 = vdwg.mxu0
    %504 = vmatprep.subr.mxu0 0.0
    %v505 = vand.u32 %v67, 4294901760
    %v506 = vsub.f32 %v67, %v505
    %v507 = vand.u32 %v506, 4294901760
    %508 = vmatpush1.xpose.msra.mxu0 %v507
    %509 = vmatprep.subr.mxu0 0.0
    %v510 = vand.u32 %v66, 4294901760
    %v511 = vsub.f32 %v66, %v510
    %v512 = vand.u32 %v511, 4294901760
    %513 = vmatpush1.xpose.msra.mxu0 %v512
    %514 = vmatprep.subr.mxu0 0.0
    %v515 = vand.u32 %v65, 4294901760
    %v516 = vsub.f32 %v65, %v515
    %v517 = vand.u32 %v516, 4294901760
    %518 = vmatpush1.xpose.msra.mxu0 %v517
    %519 = vmatprep.subr.mxu0 0.0
    %v520 = vand.u32 %v64, 4294901760
    %v521 = vsub.f32 %v64, %v520
    %v522 = vand.u32 %v521, 4294901760
    %523 = vmatpush1.xpose.msra.mxu0 %v522
    %524 = vmatprep.subr.mxu0 0.0
    %v525 = vand.u32 %v63, 4294901760
    %v526 = vsub.f32 %v63, %v525
    %v527 = vand.u32 %v526, 4294901760
    %528 = vmatpush1.xpose.msra.mxu0 %v527
    %529 = vmatprep.subr.mxu0 0.0
    %v530 = vand.u32 %v62, 4294901760
    %v531 = vsub.f32 %v62, %v530
    %v532 = vand.u32 %v531, 4294901760
    %533 = vmatpush1.xpose.msra.mxu0 %v532
    %534 = vmatprep.subr.mxu0 0.0
    %v535 = vand.u32 %v61, 4294901760
    %v536 = vsub.f32 %v61, %v535
    %v537 = vand.u32 %v536, 4294901760
    %538 = vmatpush1.xpose.msra.mxu0 %v537
    %539 = vmatprep.subr.mxu0 0.0
    %v540 = vand.u32 %v60, 4294901760
    %v541 = vsub.f32 %v60, %v540
    %v542 = vand.u32 %v541, 4294901760
    %543 = vmatpush1.xpose.msra.mxu0 %v542
    %544 = vmatprep.subr.mxu0 0.0
    %v545 = vand.u32 %v59, 4294901760
    %v546 = vsub.f32 %v59, %v545
    %v547 = vand.u32 %v546, 4294901760
    %548 = vmatpush1.xpose.msra.mxu0 %v547
    %549 = vmatprep.subr.mxu0 0.0
    %v550 = vand.u32 %v58, 4294901760
    %v551 = vsub.f32 %v58, %v550
    %v552 = vand.u32 %v551, 4294901760
    %553 = vmatpush1.xpose.msra.mxu0 %v552
    %554 = vmatprep.subr.mxu0 0.0
    %v555 = vand.u32 %v57, 4294901760
    %v556 = vsub.f32 %v57, %v555
    %v557 = vand.u32 %v556, 4294901760
    %558 = vmatpush1.xpose.msra.mxu0 %v557
    %559 = vmatprep.subr.mxu0 0.0
    %v560 = vand.u32 %v56, 4294901760
    %v561 = vsub.f32 %v56, %v560
    %v562 = vand.u32 %v561, 4294901760
    %563 = vmatpush1.xpose.msra.mxu0 %v562
    %564 = vmatprep.subr.mxu0 0.0
    %v565 = vand.u32 %v55, 4294901760
    %v566 = vsub.f32 %v55, %v565
    %v567 = vand.u32 %v566, 4294901760
    %568 = vmatpush1.xpose.msra.mxu0 %v567
    %569 = vmatprep.subr.mxu0 0.0
    %v570 = vand.u32 %v54, 4294901760
    %v571 = vsub.f32 %v54, %v570
    %v572 = vand.u32 %v571, 4294901760
    %573 = vmatpush1.xpose.msra.mxu0 %v572
    %574 = vmatprep.subr.mxu0 0.0
    %v575 = vand.u32 %v53, 4294901760
    %v576 = vsub.f32 %v53, %v575
    %v577 = vand.u32 %v576, 4294901760
    %578 = vmatpush1.xpose.msra.mxu0 %v577
    %579 = vmatprep.subr.mxu0 0.0
    %v580 = vand.u32 %v52, 4294901760
    %v581 = vsub.f32 %v52, %v580
    %v582 = vand.u32 %v581, 4294901760
    %583 = vmatpush1.xpose.msra.mxu0 %v582
    %584 = vmatprep.subr.mxu0 0.0
    %585 = vmatpush2.xpose.msra.mxu0 0.0
    %586 = vmatprep.subr.mxu0 0.0
    %587 = vmatpush2.xpose.msra.mxu0 0.0
    %588 = vmatprep.subr.mxu0 0.0
    %589 = vmatpush2.xpose.msra.mxu0 0.0
    %590 = vmatprep.subr.mxu0 0.0
    %591 = vmatpush2.xpose.msra.mxu0 0.0
    %592 = vmatprep.subr.mxu0 0.0
    %593 = vmatpush2.xpose.msra.mxu0 0.0
    %594 = vmatprep.subr.mxu0 0.0
    %595 = vmatpush2.xpose.msra.mxu0 0.0
    %596 = vmatprep.subr.mxu0 0.0
    %597 = vmatpush2.xpose.msra.mxu0 0.0
    %598 = vmatprep.subr.mxu0 0.0
    %599 = vmatpush2.xpose.msra.mxu0 0.0
    %600 = vmatprep.subr.mxu0 0.0
    %601 = vmatpush2.xpose.msra.mxu0 0.0
    %602 = vmatprep.subr.mxu0 0.0
    %603 = vmatpush2.xpose.msra.mxu0 0.0
    %604 = vmatprep.subr.mxu0 0.0
    %605 = vmatpush2.xpose.msra.mxu0 0.0
    %606 = vmatprep.subr.mxu0 0.0
    %607 = vmatpush2.xpose.msra.mxu0 0.0
    %608 = vmatprep.subr.mxu0 0.0
    %609 = vmatpush2.xpose.msra.mxu0 0.0
    %610 = vmatprep.subr.mxu0 0.0
    %611 = vmatpush2.xpose.msra.mxu0 0.0
    %612 = vmatprep.subr.mxu0 0.0
    %613 = vmatpush2.xpose.msra.mxu0 0.0
    %614 = vmatprep.subr.mxu0 0.0
    %615 = vmatpush2.xpose.msra.mxu0 0.0
    %616 = vmatprep.mubr.f32.mxu0 0.0
    %v617 = vand.u32 %v51, 4294901760
    %618 = vmatmul.mubr.f32.gmra.mxu0 %v617
    %v619 = vpop.f32.mrf.mxu0
    %v620 = vadd.f32 %v501, %v619
    %v621 = vpop.f32.mrf.mxu0
    %622 = vdwg.mxu0
    %623 = vmatprep.subr.mxu0 0.0
    %v624 = vand.u32 %v67, 4294901760
    %625 = vmatpush1.xpose.msra.mxu0 %v624
    %626 = vmatprep.subr.mxu0 0.0
    %v627 = vand.u32 %v66, 4294901760
    %628 = vmatpush1.xpose.msra.mxu0 %v627
    %629 = vmatprep.subr.mxu0 0.0
    %v630 = vand.u32 %v65, 4294901760
    %631 = vmatpush1.xpose.msra.mxu0 %v630
    %632 = vmatprep.subr.mxu0 0.0
    %v633 = vand.u32 %v64, 4294901760
    %634 = vmatpush1.xpose.msra.mxu0 %v633
    %635 = vmatprep.subr.mxu0 0.0
    %v636 = vand.u32 %v63, 4294901760
    %637 = vmatpush1.xpose.msra.mxu0 %v636
    %638 = vmatprep.subr.mxu0 0.0
    %v639 = vand.u32 %v62, 4294901760
    %640 = vmatpush1.xpose.msra.mxu0 %v639
    %641 = vmatprep.subr.mxu0 0.0
    %v642 = vand.u32 %v61, 4294901760
    %643 = vmatpush1.xpose.msra.mxu0 %v642
    %644 = vmatprep.subr.mxu0 0.0
    %v645 = vand.u32 %v60, 4294901760
    %646 = vmatpush1.xpose.msra.mxu0 %v645
    %647 = vmatprep.subr.mxu0 0.0
    %v648 = vand.u32 %v59, 4294901760
    %649 = vmatpush1.xpose.msra.mxu0 %v648
    %650 = vmatprep.subr.mxu0 0.0
    %v651 = vand.u32 %v58, 4294901760
    %652 = vmatpush1.xpose.msra.mxu0 %v651
    %653 = vmatprep.subr.mxu0 0.0
    %v654 = vand.u32 %v57, 4294901760
    %655 = vmatpush1.xpose.msra.mxu0 %v654
    %656 = vmatprep.subr.mxu0 0.0
    %v657 = vand.u32 %v56, 4294901760
    %658 = vmatpush1.xpose.msra.mxu0 %v657
    %659 = vmatprep.subr.mxu0 0.0
    %v660 = vand.u32 %v55, 4294901760
    %661 = vmatpush1.xpose.msra.mxu0 %v660
    %662 = vmatprep.subr.mxu0 0.0
    %v663 = vand.u32 %v54, 4294901760
    %664 = vmatpush1.xpose.msra.mxu0 %v663
    %665 = vmatprep.subr.mxu0 0.0
    %v666 = vand.u32 %v53, 4294901760
    %667 = vmatpush1.xpose.msra.mxu0 %v666
    %668 = vmatprep.subr.mxu0 0.0
    %v669 = vand.u32 %v52, 4294901760
    %670 = vmatpush1.xpose.msra.mxu0 %v669
    %671 = vmatprep.subr.mxu0 0.0
    %672 = vmatpush2.xpose.msra.mxu0 0.0
    %673 = vmatprep.subr.mxu0 0.0
    %674 = vmatpush2.xpose.msra.mxu0 0.0
    %675 = vmatprep.subr.mxu0 0.0
    %676 = vmatpush2.xpose.msra.mxu0 0.0
    %677 = vmatprep.subr.mxu0 0.0
    %678 = vmatpush2.xpose.msra.mxu0 0.0
    %679 = vmatprep.subr.mxu0 0.0
    %680 = vmatpush2.xpose.msra.mxu0 0.0
    %681 = vmatprep.subr.mxu0 0.0
    %682 = vmatpush2.xpose.msra.mxu0 0.0
    %683 = vmatprep.subr.mxu0 0.0
    %684 = vmatpush2.xpose.msra.mxu0 0.0
    %685 = vmatprep.subr.mxu0 0.0
    %686 = vmatpush2.xpose.msra.mxu0 0.0
    %687 = vmatprep.subr.mxu0 0.0
    %688 = vmatpush2.xpose.msra.mxu0 0.0
    %689 = vmatprep.subr.mxu0 0.0
    %690 = vmatpush2.xpose.msra.mxu0 0.0
    %691 = vmatprep.subr.mxu0 0.0
    %692 = vmatpush2.xpose.msra.mxu0 0.0
    %693 = vmatprep.subr.mxu0 0.0
    %694 = vmatpush2.xpose.msra.mxu0 0.0
    %695 = vmatprep.subr.mxu0 0.0
    %696 = vmatpush2.xpose.msra.mxu0 0.0
    %697 = vmatprep.subr.mxu0 0.0
    %698 = vmatpush2.xpose.msra.mxu0 0.0
    %699 = vmatprep.subr.mxu0 0.0
    %700 = vmatpush2.xpose.msra.mxu0 0.0
    %701 = vmatprep.subr.mxu0 0.0
    %702 = vmatpush2.xpose.msra.mxu0 0.0
    %703 = vmatprep.mubr.f32.mxu0 0.0
    %v704 = vand.u32 %v51, 4294901760
    %705 = vmatmul.mubr.f32.gmra.mxu0 %v704
    %v706 = vpop.f32.mrf.mxu0
    %v707 = vadd.f32 %v620, %v706
    %v708 = vpop.f32.mrf.mxu0
    %709 = vdwg.mxu0
    %v710 = vadd.f32 %v68, %v707
    %711 = vst [vmem:[#allocation2] sm:$0xff] %v710
    %v712 = vld [vmem:[#allocation3] sm:$0x1]
    %v713 = vand.u32 2147483647, %v52
    %v714 = vand.u32 2147483647, %v53
    %v715 = vand.u32 2147483647, %v54
    %v716 = vand.u32 2147483647, %v55
    %v717 = vand.u32 2147483647, %v56
    %v718 = vand.u32 2147483647, %v57
    %v719 = vand.u32 2147483647, %v58
    %v720 = vand.u32 2147483647, %v59
    %v721 = vand.u32 2147483647, %v60
    %v722 = vand.u32 2147483647, %v61
    %v723 = vand.u32 2147483647, %v62
    %v724 = vand.u32 2147483647, %v63
    %v725 = vand.u32 2147483647, %v64
    %v726 = vand.u32 2147483647, %v65
    %v727 = vand.u32 2147483647, %v66
    %v728 = vand.u32 2147483647, %v67
    %729 = vmatprep.subr.mxu0 0.0
    %v730 = vand.u32 %v728, 4294901760
    %731 = vmatpush1.xpose.msra.mxu0 %v730
    %732 = vmatprep.subr.mxu0 0.0
    %v733 = vand.u32 %v727, 4294901760
    %734 = vmatpush1.xpose.msra.mxu0 %v733
    %735 = vmatprep.subr.mxu0 0.0
    %v736 = vand.u32 %v726, 4294901760
    %737 = vmatpush1.xpose.msra.mxu0 %v736
    %738 = vmatprep.subr.mxu0 0.0
    %v739 = vand.u32 %v725, 4294901760
    %740 = vmatpush1.xpose.msra.mxu0 %v739
    %741 = vmatprep.subr.mxu0 0.0
    %v742 = vand.u32 %v724, 4294901760
    %743 = vmatpush1.xpose.msra.mxu0 %v742
    %744 = vmatprep.subr.mxu0 0.0
    %v745 = vand.u32 %v723, 4294901760
    %746 = vmatpush1.xpose.msra.mxu0 %v745
    %747 = vmatprep.subr.mxu0 0.0
    %v748 = vand.u32 %v722, 4294901760
    %749 = vmatpush1.xpose.msra.mxu0 %v748
    %750 = vmatprep.subr.mxu0 0.0
    %v751 = vand.u32 %v721, 4294901760
    %752 = vmatpush1.xpose.msra.mxu0 %v751
    %753 = vmatprep.subr.mxu0 0.0
    %v754 = vand.u32 %v720, 4294901760
    %755 = vmatpush1.xpose.msra.mxu0 %v754
    %756 = vmatprep.subr.mxu0 0.0
    %v757 = vand.u32 %v719, 4294901760
    %758 = vmatpush1.xpose.msra.mxu0 %v757
    %759 = vmatprep.subr.mxu0 0.0
    %v760 = vand.u32 %v718, 4294901760
    %761 = vmatpush1.xpose.msra.mxu0 %v760
    %762 = vmatprep.subr.mxu0 0.0
    %v763 = vand.u32 %v717, 4294901760
    %764 = vmatpush1.xpose.msra.mxu0 %v763
    %765 = vmatprep.subr.mxu0 0.0
    %v766 = vand.u32 %v716, 4294901760
    %767 = vmatpush1.xpose.msra.mxu0 %v766
    %768 = vmatprep.subr.mxu0 0.0
    %v769 = vand.u32 %v715, 4294901760
    %770 = vmatpush1.xpose.msra.mxu0 %v769
    %771 = vmatprep.subr.mxu0 0.0
    %v772 = vand.u32 %v714, 4294901760
    %773 = vmatpush1.xpose.msra.mxu0 %v772
    %774 = vmatprep.subr.mxu0 0.0
    %v775 = vand.u32 %v713, 4294901760
    %776 = vmatpush1.xpose.msra.mxu0 %v775
    %777 = vmatprep.subr.mxu0 0.0
    %778 = vmatpush2.xpose.msra.mxu0 0.0
    %779 = vmatprep.subr.mxu0 0.0
    %780 = vmatpush2.xpose.msra.mxu0 0.0
    %781 = vmatprep.subr.mxu0 0.0
    %782 = vmatpush2.xpose.msra.mxu0 0.0
    %783 = vmatprep.subr.mxu0 0.0
    %784 = vmatpush2.xpose.msra.mxu0 0.0
    %785 = vmatprep.subr.mxu0 0.0
    %786 = vmatpush2.xpose.msra.mxu0 0.0
    %787 = vmatprep.subr.mxu0 0.0
    %788 = vmatpush2.xpose.msra.mxu0 0.0
    %789 = vmatprep.subr.mxu0 0.0
    %790 = vmatpush2.xpose.msra.mxu0 0.0
    %791 = vmatprep.subr.mxu0 0.0
    %792 = vmatpush2.xpose.msra.mxu0 0.0
    %793 = vmatprep.subr.mxu0 0.0
    %794 = vmatpush2.xpose.msra.mxu0 0.0
    %795 = vmatprep.subr.mxu0 0.0
    %796 = vmatpush2.xpose.msra.mxu0 0.0
    %797 = vmatprep.subr.mxu0 0.0
    %798 = vmatpush2.xpose.msra.mxu0 0.0
    %799 = vmatprep.subr.mxu0 0.0
    %800 = vmatpush2.xpose.msra.mxu0 0.0
    %801 = vmatprep.subr.mxu0 0.0
    %802 = vmatpush2.xpose.msra.mxu0 0.0
    %803 = vmatprep.subr.mxu0 0.0
    %804 = vmatpush2.xpose.msra.mxu0 0.0
    %805 = vmatprep.subr.mxu0 0.0
    %806 = vmatpush2.xpose.msra.mxu0 0.0
    %807 = vmatprep.subr.mxu0 0.0
    %808 = vmatpush2.xpose.msra.mxu0 0.0
    %809 = vmatprep.mubr.f32.mxu0 0.0
    %810 = vmatmul.mubr.f32.gmra.mxu0 0.0
    %v811 = vpop.f32.mrf.mxu0
    %v812 = vadd.f32 0.0, %v811
    %v813 = vpop.f32.mrf.mxu0
    %814 = vdwg.mxu0
    %815 = vmatprep.subr.mxu0 0.0
    %v816 = vand.u32 %v728, 4294901760
    %v817 = vsub.f32 %v728, %v816
    %v818 = vand.u32 %v817, 4294901760
    %v819 = vsub.f32 %v817, %v818
    %v820 = vand.u32 %v819, 4294901760
    %821 = vmatpush1.xpose.msra.mxu0 %v820
    %822 = vmatprep.subr.mxu0 0.0
    %v823 = vand.u32 %v727, 4294901760
    %v824 = vsub.f32 %v727, %v823
    %v825 = vand.u32 %v824, 4294901760
    %v826 = vsub.f32 %v824, %v825
    %v827 = vand.u32 %v826, 4294901760
    %828 = vmatpush1.xpose.msra.mxu0 %v827
    %829 = vmatprep.subr.mxu0 0.0
    %v830 = vand.u32 %v726, 4294901760
    %v831 = vsub.f32 %v726, %v830
    %v832 = vand.u32 %v831, 4294901760
    %v833 = vsub.f32 %v831, %v832
    %v834 = vand.u32 %v833, 4294901760
    %835 = vmatpush1.xpose.msra.mxu0 %v834
    %836 = vmatprep.subr.mxu0 0.0
    %v837 = vand.u32 %v725, 4294901760
    %v838 = vsub.f32 %v725, %v837
    %v839 = vand.u32 %v838, 4294901760
    %v840 = vsub.f32 %v838, %v839
    %v841 = vand.u32 %v840, 4294901760
    %842 = vmatpush1.xpose.msra.mxu0 %v841
    %843 = vmatprep.subr.mxu0 0.0
    %v844 = vand.u32 %v724, 4294901760
    %v845 = vsub.f32 %v724, %v844
    %v846 = vand.u32 %v845, 4294901760
    %v847 = vsub.f32 %v845, %v846
    %v848 = vand.u32 %v847, 4294901760
    %849 = vmatpush1.xpose.msra.mxu0 %v848
    %850 = vmatprep.subr.mxu0 0.0
    %v851 = vand.u32 %v723, 4294901760
    %v852 = vsub.f32 %v723, %v851
    %v853 = vand.u32 %v852, 4294901760
    %v854 = vsub.f32 %v852, %v853
    %v855 = vand.u32 %v854, 4294901760
    %856 = vmatpush1.xpose.msra.mxu0 %v855
    %857 = vmatprep.subr.mxu0 0.0
    %v858 = vand.u32 %v722, 4294901760
    %v859 = vsub.f32 %v722, %v858
    %v860 = vand.u32 %v859, 4294901760
    %v861 = vsub.f32 %v859, %v860
    %v862 = vand.u32 %v861, 4294901760
    %863 = vmatpush1.xpose.msra.mxu0 %v862
    %864 = vmatprep.subr.mxu0 0.0
    %v865 = vand.u32 %v721, 4294901760
    %v866 = vsub.f32 %v721, %v865
    %v867 = vand.u32 %v866, 4294901760
    %v868 = vsub.f32 %v866, %v867
    %v869 = vand.u32 %v868, 4294901760
    %870 = vmatpush1.xpose.msra.mxu0 %v869
    %871 = vmatprep.subr.mxu0 0.0
    %v872 = vand.u32 %v720, 4294901760
    %v873 = vsub.f32 %v720, %v872
    %v874 = vand.u32 %v873, 4294901760
    %v875 = vsub.f32 %v873, %v874
    %v876 = vand.u32 %v875, 4294901760
    %877 = vmatpush1.xpose.msra.mxu0 %v876
    %878 = vmatprep.subr.mxu0 0.0
    %v879 = vand.u32 %v719, 4294901760
    %v880 = vsub.f32 %v719, %v879
    %v881 = vand.u32 %v880, 4294901760
    %v882 = vsub.f32 %v880, %v881
    %v883 = vand.u32 %v882, 4294901760
    %884 = vmatpush1.xpose.msra.mxu0 %v883
    %885 = vmatprep.subr.mxu0 0.0
    %v886 = vand.u32 %v718, 4294901760
    %v887 = vsub.f32 %v718, %v886
    %v888 = vand.u32 %v887, 4294901760
    %v889 = vsub.f32 %v887, %v888
    %v890 = vand.u32 %v889, 4294901760
    %891 = vmatpush1.xpose.msra.mxu0 %v890
    %892 = vmatprep.subr.mxu0 0.0
    %v893 = vand.u32 %v717, 4294901760
    %v894 = vsub.f32 %v717, %v893
    %v895 = vand.u32 %v894, 4294901760
    %v896 = vsub.f32 %v894, %v895
    %v897 = vand.u32 %v896, 4294901760
    %898 = vmatpush1.xpose.msra.mxu0 %v897
    %899 = vmatprep.subr.mxu0 0.0
    %v900 = vand.u32 %v716, 4294901760
    %v901 = vsub.f32 %v716, %v900
    %v902 = vand.u32 %v901, 4294901760
    %v903 = vsub.f32 %v901, %v902
    %v904 = vand.u32 %v903, 4294901760
    %905 = vmatpush1.xpose.msra.mxu0 %v904
    %906 = vmatprep.subr.mxu0 0.0
    %v907 = vand.u32 %v715, 4294901760
    %v908 = vsub.f32 %v715, %v907
    %v909 = vand.u32 %v908, 4294901760
    %v910 = vsub.f32 %v908, %v909
    %v911 = vand.u32 %v910, 4294901760
    %912 = vmatpush1.xpose.msra.mxu0 %v911
    %913 = vmatprep.subr.mxu0 0.0
    %v914 = vand.u32 %v714, 4294901760
    %v915 = vsub.f32 %v714, %v914
    %v916 = vand.u32 %v915, 4294901760
    %v917 = vsub.f32 %v915, %v916
    %v918 = vand.u32 %v917, 4294901760
    %919 = vmatpush1.xpose.msra.mxu0 %v918
    %920 = vmatprep.subr.mxu0 0.0
    %v921 = vand.u32 %v713, 4294901760
    %v922 = vsub.f32 %v713, %v921
    %v923 = vand.u32 %v922, 4294901760
    %v924 = vsub.f32 %v922, %v923
    %v925 = vand.u32 %v924, 4294901760
    %926 = vmatpush1.xpose.msra.mxu0 %v925
    %927 = vmatprep.subr.mxu0 0.0
    %928 = vmatpush2.xpose.msra.mxu0 0.0
    %929 = vmatprep.subr.mxu0 0.0
    %930 = vmatpush2.xpose.msra.mxu0 0.0
    %931 = vmatprep.subr.mxu0 0.0
    %932 = vmatpush2.xpose.msra.mxu0 0.0
    %933 = vmatprep.subr.mxu0 0.0
    %934 = vmatpush2.xpose.msra.mxu0 0.0
    %935 = vmatprep.subr.mxu0 0.0
    %936 = vmatpush2.xpose.msra.mxu0 0.0
    %937 = vmatprep.subr.mxu0 0.0
    %938 = vmatpush2.xpose.msra.mxu0 0.0
    %939 = vmatprep.subr.mxu0 0.0
    %940 = vmatpush2.xpose.msra.mxu0 0.0
    %941 = vmatprep.subr.mxu0 0.0
    %942 = vmatpush2.xpose.msra.mxu0 0.0
    %943 = vmatprep.subr.mxu0 0.0
    %944 = vmatpush2.xpose.msra.mxu0 0.0
    %945 = vmatprep.subr.mxu0 0.0
    %946 = vmatpush2.xpose.msra.mxu0 0.0
    %947 = vmatprep.subr.mxu0 0.0
    %948 = vmatpush2.xpose.msra.mxu0 0.0
    %949 = vmatprep.subr.mxu0 0.0
    %950 = vmatpush2.xpose.msra.mxu0 0.0
    %951 = vmatprep.subr.mxu0 0.0
    %952 = vmatpush2.xpose.msra.mxu0 0.0
    %953 = vmatprep.subr.mxu0 0.0
    %954 = vmatpush2.xpose.msra.mxu0 0.0
    %955 = vmatprep.subr.mxu0 0.0
    %956 = vmatpush2.xpose.msra.mxu0 0.0
    %957 = vmatprep.subr.mxu0 0.0
    %958 = vmatpush2.xpose.msra.mxu0 0.0
    %959 = vmatprep.mubr.f32.mxu0 0.0
    %960 = vmatmul.mubr.f32.gmra.mxu0 1.0
    %v961 = vpop.f32.mrf.mxu0
    %v962 = vadd.f32 %v812, %v961
    %v963 = vpop.f32.mrf.mxu0
    %964 = vdwg.mxu0
    %965 = vmatprep.subr.mxu0 0.0
    %v966 = vand.u32 %v728, 4294901760
    %v967 = vsub.f32 %v728, %v966
    %968 = vmatpush1.xpose.msra.mxu0 %v967
    %969 = vmatprep.subr.mxu0 0.0
    %v970 = vand.u32 %v727, 4294901760
    %v971 = vsub.f32 %v727, %v970
    %972 = vmatpush1.xpose.msra.mxu0 %v971
    %973 = vmatprep.subr.mxu0 0.0
    %v974 = vand.u32 %v726, 4294901760
    %v975 = vsub.f32 %v726, %v974
    %976 = vmatpush1.xpose.msra.mxu0 %v975
    %977 = vmatprep.subr.mxu0 0.0
    %v978 = vand.u32 %v725, 4294901760
    %v979 = vsub.f32 %v725, %v978
    %980 = vmatpush1.xpose.msra.mxu0 %v979
    %981 = vmatprep.subr.mxu0 0.0
    %v982 = vand.u32 %v724, 4294901760
    %v983 = vsub.f32 %v724, %v982
    %984 = vmatpush1.xpose.msra.mxu0 %v983
    %985 = vmatprep.subr.mxu0 0.0
    %v986 = vand.u32 %v723, 4294901760
    %v987 = vsub.f32 %v723, %v986
    %988 = vmatpush1.xpose.msra.mxu0 %v987
    %989 = vmatprep.subr.mxu0 0.0
    %v990 = vand.u32 %v722, 4294901760
    %v991 = vsub.f32 %v722, %v990
    %992 = vmatpush1.xpose.msra.mxu0 %v991
    %993 = vmatprep.subr.mxu0 0.0
    %v994 = vand.u32 %v721, 4294901760
    %v995 = vsub.f32 %v721, %v994
    %996 = vmatpush1.xpose.msra.mxu0 %v995
    %997 = vmatprep.subr.mxu0 0.0
    %v998 = vand.u32 %v720, 4294901760
    %v999 = vsub.f32 %v720, %v998
    %1000 = vmatpush1.xpose.msra.mxu0 %v999
    %1001 = vmatprep.subr.mxu0 0.0
    %v1002 = vand.u32 %v719, 4294901760
    %v1003 = vsub.f32 %v719, %v1002
    %1004 = vmatpush1.xpose.msra.mxu0 %v1003
    %1005 = vmatprep.subr.mxu0 0.0
    %v1006 = vand.u32 %v718, 4294901760
    %v1007 = vsub.f32 %v718, %v1006
    %1008 = vmatpush1.xpose.msra.mxu0 %v1007
    %1009 = vmatprep.subr.mxu0 0.0
    %v1010 = vand.u32 %v717, 4294901760
    %v1011 = vsub.f32 %v717, %v1010
    %1012 = vmatpush1.xpose.msra.mxu0 %v1011
    %1013 = vmatprep.subr.mxu0 0.0
    %v1014 = vand.u32 %v716, 4294901760
    %v1015 = vsub.f32 %v716, %v1014
    %1016 = vmatpush1.xpose.msra.mxu0 %v1015
    %1017 = vmatprep.subr.mxu0 0.0
    %v1018 = vand.u32 %v715, 4294901760
    %v1019 = vsub.f32 %v715, %v1018
    %1020 = vmatpush1.xpose.msra.mxu0 %v1019
    %1021 = vmatprep.subr.mxu0 0.0
    %v1022 = vand.u32 %v714, 4294901760
    %v1023 = vsub.f32 %v714, %v1022
    %1024 = vmatpush1.xpose.msra.mxu0 %v1023
    %1025 = vmatprep.subr.mxu0 0.0
    %v1026 = vand.u32 %v713, 4294901760
    %v1027 = vsub.f32 %v713, %v1026
    %1028 = vmatpush1.xpose.msra.mxu0 %v1027
    %1029 = vmatprep.subr.mxu0 0.0
    %1030 = vmatpush2.xpose.msra.mxu0 0.0
    %1031 = vmatprep.subr.mxu0 0.0
    %1032 = vmatpush2.xpose.msra.mxu0 0.0
    %1033 = vmatprep.subr.mxu0 0.0
    %1034 = vmatpush2.xpose.msra.mxu0 0.0
    %1035 = vmatprep.subr.mxu0 0.0
    %1036 = vmatpush2.xpose.msra.mxu0 0.0
    %1037 = vmatprep.subr.mxu0 0.0
    %1038 = vmatpush2.xpose.msra.mxu0 0.0
    %1039 = vmatprep.subr.mxu0 0.0
    %1040 = vmatpush2.xpose.msra.mxu0 0.0
    %1041 = vmatprep.subr.mxu0 0.0
    %1042 = vmatpush2.xpose.msra.mxu0 0.0
    %1043 = vmatprep.subr.mxu0 0.0
    %1044 = vmatpush2.xpose.msra.mxu0 0.0
    %1045 = vmatprep.subr.mxu0 0.0
    %1046 = vmatpush2.xpose.msra.mxu0 0.0
    %1047 = vmatprep.subr.mxu0 0.0
    %1048 = vmatpush2.xpose.msra.mxu0 0.0
    %1049 = vmatprep.subr.mxu0 0.0
    %1050 = vmatpush2.xpose.msra.mxu0 0.0
    %1051 = vmatprep.subr.mxu0 0.0
    %1052 = vmatpush2.xpose.msra.mxu0 0.0
    %1053 = vmatprep.subr.mxu0 0.0
    %1054 = vmatpush2.xpose.msra.mxu0 0.0
    %1055 = vmatprep.subr.mxu0 0.0
    %1056 = vmatpush2.xpose.msra.mxu0 0.0
    %1057 = vmatprep.subr.mxu0 0.0
    %1058 = vmatpush2.xpose.msra.mxu0 0.0
    %1059 = vmatprep.subr.mxu0 0.0
    %1060 = vmatpush2.xpose.msra.mxu0 0.0
    %1061 = vmatprep.mubr.f32.mxu0 0.0
    %1062 = vmatmul.mubr.f32.gmra.mxu0 0.0
    %v1063 = vpop.f32.mrf.mxu0
    %v1064 = vadd.f32 %v962, %v1063
    %v1065 = vpop.f32.mrf.mxu0
    %1066 = vdwg.mxu0
    %1067 = vmatprep.subr.mxu0 0.0
    %v1068 = vand.u32 %v728, 4294901760
    %1069 = vmatpush1.xpose.msra.mxu0 %v1068
    %1070 = vmatprep.subr.mxu0 0.0
    %v1071 = vand.u32 %v727, 4294901760
    %1072 = vmatpush1.xpose.msra.mxu0 %v1071
    %1073 = vmatprep.subr.mxu0 0.0
    %v1074 = vand.u32 %v726, 4294901760
    %1075 = vmatpush1.xpose.msra.mxu0 %v1074
    %1076 = vmatprep.subr.mxu0 0.0
    %v1077 = vand.u32 %v725, 4294901760
    %1078 = vmatpush1.xpose.msra.mxu0 %v1077
    %1079 = vmatprep.subr.mxu0 0.0
    %v1080 = vand.u32 %v724, 4294901760
    %1081 = vmatpush1.xpose.msra.mxu0 %v1080
    %1082 = vmatprep.subr.mxu0 0.0
    %v1083 = vand.u32 %v723, 4294901760
    %1084 = vmatpush1.xpose.msra.mxu0 %v1083
    %1085 = vmatprep.subr.mxu0 0.0
    %v1086 = vand.u32 %v722, 4294901760
    %1087 = vmatpush1.xpose.msra.mxu0 %v1086
    %1088 = vmatprep.subr.mxu0 0.0
    %v1089 = vand.u32 %v721, 4294901760
    %1090 = vmatpush1.xpose.msra.mxu0 %v1089
    %1091 = vmatprep.subr.mxu0 0.0
    %v1092 = vand.u32 %v720, 4294901760
    %1093 = vmatpush1.xpose.msra.mxu0 %v1092
    %1094 = vmatprep.subr.mxu0 0.0
    %v1095 = vand.u32 %v719, 4294901760
    %1096 = vmatpush1.xpose.msra.mxu0 %v1095
    %1097 = vmatprep.subr.mxu0 0.0
    %v1098 = vand.u32 %v718, 4294901760
    %1099 = vmatpush1.xpose.msra.mxu0 %v1098
    %1100 = vmatprep.subr.mxu0 0.0
    %v1101 = vand.u32 %v717, 4294901760
    %1102 = vmatpush1.xpose.msra.mxu0 %v1101
    %1103 = vmatprep.subr.mxu0 0.0
    %v1104 = vand.u32 %v716, 4294901760
    %1105 = vmatpush1.xpose.msra.mxu0 %v1104
    %1106 = vmatprep.subr.mxu0 0.0
    %v1107 = vand.u32 %v715, 4294901760
    %1108 = vmatpush1.xpose.msra.mxu0 %v1107
    %1109 = vmatprep.subr.mxu0 0.0
    %v1110 = vand.u32 %v714, 4294901760
    %1111 = vmatpush1.xpose.msra.mxu0 %v1110
    %1112 = vmatprep.subr.mxu0 0.0
    %v1113 = vand.u32 %v713, 4294901760
    %1114 = vmatpush1.xpose.msra.mxu0 %v1113
    %1115 = vmatprep.subr.mxu0 0.0
    %1116 = vmatpush2.xpose.msra.mxu0 0.0
    %1117 = vmatprep.subr.mxu0 0.0
    %1118 = vmatpush2.xpose.msra.mxu0 0.0
    %1119 = vmatprep.subr.mxu0 0.0
    %1120 = vmatpush2.xpose.msra.mxu0 0.0
    %1121 = vmatprep.subr.mxu0 0.0
    %1122 = vmatpush2.xpose.msra.mxu0 0.0
    %1123 = vmatprep.subr.mxu0 0.0
    %1124 = vmatpush2.xpose.msra.mxu0 0.0
    %1125 = vmatprep.subr.mxu0 0.0
    %1126 = vmatpush2.xpose.msra.mxu0 0.0
    %1127 = vmatprep.subr.mxu0 0.0
    %1128 = vmatpush2.xpose.msra.mxu0 0.0
    %1129 = vmatprep.subr.mxu0 0.0
    %1130 = vmatpush2.xpose.msra.mxu0 0.0
    %1131 = vmatprep.subr.mxu0 0.0
    %1132 = vmatpush2.xpose.msra.mxu0 0.0
    %1133 = vmatprep.subr.mxu0 0.0
    %1134 = vmatpush2.xpose.msra.mxu0 0.0
    %1135 = vmatprep.subr.mxu0 0.0
    %1136 = vmatpush2.xpose.msra.mxu0 0.0
    %1137 = vmatprep.subr.mxu0 0.0
    %1138 = vmatpush2.xpose.msra.mxu0 0.0
    %1139 = vmatprep.subr.mxu0 0.0
    %1140 = vmatpush2.xpose.msra.mxu0 0.0
    %1141 = vmatprep.subr.mxu0 0.0
    %1142 = vmatpush2.xpose.msra.mxu0 0.0
    %1143 = vmatprep.subr.mxu0 0.0
    %1144 = vmatpush2.xpose.msra.mxu0 0.0
    %1145 = vmatprep.subr.mxu0 0.0
    %1146 = vmatpush2.xpose.msra.mxu0 0.0
    %1147 = vmatprep.mubr.f32.mxu0 0.0
    %1148 = vmatmul.mubr.f32.gmra.mxu0 0.0
    %v1149 = vpop.f32.mrf.mxu0
    %v1150 = vadd.f32 %v1064, %v1149
    %v1151 = vpop.f32.mrf.mxu0
    %1152 = vdwg.mxu0
    %1153 = vmatprep.subr.mxu0 0.0
    %v1154 = vand.u32 %v728, 4294901760
    %v1155 = vsub.f32 %v728, %v1154
    %v1156 = vand.u32 %v1155, 4294901760
    %1157 = vmatpush1.xpose.msra.mxu0 %v1156
    %1158 = vmatprep.subr.mxu0 0.0
    %v1159 = vand.u32 %v727, 4294901760
    %v1160 = vsub.f32 %v727, %v1159
    %v1161 = vand.u32 %v1160, 4294901760
    %1162 = vmatpush1.xpose.msra.mxu0 %v1161
    %1163 = vmatprep.subr.mxu0 0.0
    %v1164 = vand.u32 %v726, 4294901760
    %v1165 = vsub.f32 %v726, %v1164
    %v1166 = vand.u32 %v1165, 4294901760
    %1167 = vmatpush1.xpose.msra.mxu0 %v1166
    %1168 = vmatprep.subr.mxu0 0.0
    %v1169 = vand.u32 %v725, 4294901760
    %v1170 = vsub.f32 %v725, %v1169
    %v1171 = vand.u32 %v1170, 4294901760
    %1172 = vmatpush1.xpose.msra.mxu0 %v1171
    %1173 = vmatprep.subr.mxu0 0.0
    %v1174 = vand.u32 %v724, 4294901760
    %v1175 = vsub.f32 %v724, %v1174
    %v1176 = vand.u32 %v1175, 4294901760
    %1177 = vmatpush1.xpose.msra.mxu0 %v1176
    %1178 = vmatprep.subr.mxu0 0.0
    %v1179 = vand.u32 %v723, 4294901760
    %v1180 = vsub.f32 %v723, %v1179
    %v1181 = vand.u32 %v1180, 4294901760
    %1182 = vmatpush1.xpose.msra.mxu0 %v1181
    %1183 = vmatprep.subr.mxu0 0.0
    %v1184 = vand.u32 %v722, 4294901760
    %v1185 = vsub.f32 %v722, %v1184
    %v1186 = vand.u32 %v1185, 4294901760
    %1187 = vmatpush1.xpose.msra.mxu0 %v1186
    %1188 = vmatprep.subr.mxu0 0.0
    %v1189 = vand.u32 %v721, 4294901760
    %v1190 = vsub.f32 %v721, %v1189
    %v1191 = vand.u32 %v1190, 4294901760
    %1192 = vmatpush1.xpose.msra.mxu0 %v1191
    %1193 = vmatprep.subr.mxu0 0.0
    %v1194 = vand.u32 %v720, 4294901760
    %v1195 = vsub.f32 %v720, %v1194
    %v1196 = vand.u32 %v1195, 4294901760
    %1197 = vmatpush1.xpose.msra.mxu0 %v1196
    %1198 = vmatprep.subr.mxu0 0.0
    %v1199 = vand.u32 %v719, 4294901760
    %v1200 = vsub.f32 %v719, %v1199
    %v1201 = vand.u32 %v1200, 4294901760
    %1202 = vmatpush1.xpose.msra.mxu0 %v1201
    %1203 = vmatprep.subr.mxu0 0.0
    %v1204 = vand.u32 %v718, 4294901760
    %v1205 = vsub.f32 %v718, %v1204
    %v1206 = vand.u32 %v1205, 4294901760
    %1207 = vmatpush1.xpose.msra.mxu0 %v1206
    %1208 = vmatprep.subr.mxu0 0.0
    %v1209 = vand.u32 %v717, 4294901760
    %v1210 = vsub.f32 %v717, %v1209
    %v1211 = vand.u32 %v1210, 4294901760
    %1212 = vmatpush1.xpose.msra.mxu0 %v1211
    %1213 = vmatprep.subr.mxu0 0.0
    %v1214 = vand.u32 %v716, 4294901760
    %v1215 = vsub.f32 %v716, %v1214
    %v1216 = vand.u32 %v1215, 4294901760
    %1217 = vmatpush1.xpose.msra.mxu0 %v1216
    %1218 = vmatprep.subr.mxu0 0.0
    %v1219 = vand.u32 %v715, 4294901760
    %v1220 = vsub.f32 %v715, %v1219
    %v1221 = vand.u32 %v1220, 4294901760
    %1222 = vmatpush1.xpose.msra.mxu0 %v1221
    %1223 = vmatprep.subr.mxu0 0.0
    %v1224 = vand.u32 %v714, 4294901760
    %v1225 = vsub.f32 %v714, %v1224
    %v1226 = vand.u32 %v1225, 4294901760
    %1227 = vmatpush1.xpose.msra.mxu0 %v1226
    %1228 = vmatprep.subr.mxu0 0.0
    %v1229 = vand.u32 %v713, 4294901760
    %v1230 = vsub.f32 %v713, %v1229
    %v1231 = vand.u32 %v1230, 4294901760
    %1232 = vmatpush1.xpose.msra.mxu0 %v1231
    %1233 = vmatprep.subr.mxu0 0.0
    %1234 = vmatpush2.xpose.msra.mxu0 0.0
    %1235 = vmatprep.subr.mxu0 0.0
    %1236 = vmatpush2.xpose.msra.mxu0 0.0
    %1237 = vmatprep.subr.mxu0 0.0
    %1238 = vmatpush2.xpose.msra.mxu0 0.0
    %1239 = vmatprep.subr.mxu0 0.0
    %1240 = vmatpush2.xpose.msra.mxu0 0.0
    %1241 = vmatprep.subr.mxu0 0.0
    %1242 = vmatpush2.xpose.msra.mxu0 0.0
    %1243 = vmatprep.subr.mxu0 0.0
    %1244 = vmatpush2.xpose.msra.mxu0 0.0
    %1245 = vmatprep.subr.mxu0 0.0
    %1246 = vmatpush2.xpose.msra.mxu0 0.0
    %1247 = vmatprep.subr.mxu0 0.0
    %1248 = vmatpush2.xpose.msra.mxu0 0.0
    %1249 = vmatprep.subr.mxu0 0.0
    %1250 = vmatpush2.xpose.msra.mxu0 0.0
    %1251 = vmatprep.subr.mxu0 0.0
    %1252 = vmatpush2.xpose.msra.mxu0 0.0
    %1253 = vmatprep.subr.mxu0 0.0
    %1254 = vmatpush2.xpose.msra.mxu0 0.0
    %1255 = vmatprep.subr.mxu0 0.0
    %1256 = vmatpush2.xpose.msra.mxu0 0.0
    %1257 = vmatprep.subr.mxu0 0.0
    %1258 = vmatpush2.xpose.msra.mxu0 0.0
    %1259 = vmatprep.subr.mxu0 0.0
    %1260 = vmatpush2.xpose.msra.mxu0 0.0
    %1261 = vmatprep.subr.mxu0 0.0
    %1262 = vmatpush2.xpose.msra.mxu0 0.0
    %1263 = vmatprep.subr.mxu0 0.0
    %1264 = vmatpush2.xpose.msra.mxu0 0.0
    %1265 = vmatprep.mubr.f32.mxu0 0.0
    %1266 = vmatmul.mubr.f32.gmra.mxu0 1.0
    %v1267 = vpop.f32.mrf.mxu0
    %v1268 = vadd.f32 %v1150, %v1267
    %v1269 = vpop.f32.mrf.mxu0
    %1270 = vdwg.mxu0
    %1271 = vmatprep.subr.mxu0 0.0
    %v1272 = vand.u32 %v728, 4294901760
    %1273 = vmatpush1.xpose.msra.mxu0 %v1272
    %1274 = vmatprep.subr.mxu0 0.0
    %v1275 = vand.u32 %v727, 4294901760
    %1276 = vmatpush1.xpose.msra.mxu0 %v1275
    %1277 = vmatprep.subr.mxu0 0.0
    %v1278 = vand.u32 %v726, 4294901760
    %1279 = vmatpush1.xpose.msra.mxu0 %v1278
    %1280 = vmatprep.subr.mxu0 0.0
    %v1281 = vand.u32 %v725, 4294901760
    %1282 = vmatpush1.xpose.msra.mxu0 %v1281
    %1283 = vmatprep.subr.mxu0 0.0
    %v1284 = vand.u32 %v724, 4294901760
    %1285 = vmatpush1.xpose.msra.mxu0 %v1284
    %1286 = vmatprep.subr.mxu0 0.0
    %v1287 = vand.u32 %v723, 4294901760
    %1288 = vmatpush1.xpose.msra.mxu0 %v1287
    %1289 = vmatprep.subr.mxu0 0.0
    %v1290 = vand.u32 %v722, 4294901760
    %1291 = vmatpush1.xpose.msra.mxu0 %v1290
    %1292 = vmatprep.subr.mxu0 0.0
    %v1293 = vand.u32 %v721, 4294901760
    %1294 = vmatpush1.xpose.msra.mxu0 %v1293
    %1295 = vmatprep.subr.mxu0 0.0
    %v1296 = vand.u32 %v720, 4294901760
    %1297 = vmatpush1.xpose.msra.mxu0 %v1296
    %1298 = vmatprep.subr.mxu0 0.0
    %v1299 = vand.u32 %v719, 4294901760
    %1300 = vmatpush1.xpose.msra.mxu0 %v1299
    %1301 = vmatprep.subr.mxu0 0.0
    %v1302 = vand.u32 %v718, 4294901760
    %1303 = vmatpush1.xpose.msra.mxu0 %v1302
    %1304 = vmatprep.subr.mxu0 0.0
    %v1305 = vand.u32 %v717, 4294901760
    %1306 = vmatpush1.xpose.msra.mxu0 %v1305
    %1307 = vmatprep.subr.mxu0 0.0
    %v1308 = vand.u32 %v716, 4294901760
    %1309 = vmatpush1.xpose.msra.mxu0 %v1308
    %1310 = vmatprep.subr.mxu0 0.0
    %v1311 = vand.u32 %v715, 4294901760
    %1312 = vmatpush1.xpose.msra.mxu0 %v1311
    %1313 = vmatprep.subr.mxu0 0.0
    %v1314 = vand.u32 %v714, 4294901760
    %1315 = vmatpush1.xpose.msra.mxu0 %v1314
    %1316 = vmatprep.subr.mxu0 0.0
    %v1317 = vand.u32 %v713, 4294901760
    %1318 = vmatpush1.xpose.msra.mxu0 %v1317
    %1319 = vmatprep.subr.mxu0 0.0
    %1320 = vmatpush2.xpose.msra.mxu0 0.0
    %1321 = vmatprep.subr.mxu0 0.0
    %1322 = vmatpush2.xpose.msra.mxu0 0.0
    %1323 = vmatprep.subr.mxu0 0.0
    %1324 = vmatpush2.xpose.msra.mxu0 0.0
    %1325 = vmatprep.subr.mxu0 0.0
    %1326 = vmatpush2.xpose.msra.mxu0 0.0
    %1327 = vmatprep.subr.mxu0 0.0
    %1328 = vmatpush2.xpose.msra.mxu0 0.0
    %1329 = vmatprep.subr.mxu0 0.0
    %1330 = vmatpush2.xpose.msra.mxu0 0.0
    %1331 = vmatprep.subr.mxu0 0.0
    %1332 = vmatpush2.xpose.msra.mxu0 0.0
    %1333 = vmatprep.subr.mxu0 0.0
    %1334 = vmatpush2.xpose.msra.mxu0 0.0
    %1335 = vmatprep.subr.mxu0 0.0
    %1336 = vmatpush2.xpose.msra.mxu0 0.0
    %1337 = vmatprep.subr.mxu0 0.0
    %1338 = vmatpush2.xpose.msra.mxu0 0.0
    %1339 = vmatprep.subr.mxu0 0.0
    %1340 = vmatpush2.xpose.msra.mxu0 0.0
    %1341 = vmatprep.subr.mxu0 0.0
    %1342 = vmatpush2.xpose.msra.mxu0 0.0
    %1343 = vmatprep.subr.mxu0 0.0
    %1344 = vmatpush2.xpose.msra.mxu0 0.0
    %1345 = vmatprep.subr.mxu0 0.0
    %1346 = vmatpush2.xpose.msra.mxu0 0.0
    %1347 = vmatprep.subr.mxu0 0.0
    %1348 = vmatpush2.xpose.msra.mxu0 0.0
    %1349 = vmatprep.subr.mxu0 0.0
    %1350 = vmatpush2.xpose.msra.mxu0 0.0
    %1351 = vmatprep.mubr.f32.mxu0 0.0
    %1352 = vmatmul.mubr.f32.gmra.mxu0 1.0
    %v1353 = vpop.f32.mrf.mxu0
    %v1354 = vadd.f32 %v1268, %v1353
    %v1355 = vpop.f32.mrf.mxu0
    %1356 = vdwg.mxu0
    %v1357 = vadd.f32 %v712, %v1354
    %1358 = vst [vmem:[#allocation3] sm:$0x1] %v1357
    // Predicated region
    $region30: #{tpu_custom_call.1} parent=1 // pred_check
      %p1359 = pneg %p45
    $region31: #{tpu_custom_call.1} parent=1 // pred_check_branch
      %1361 = sbr.rel (%p1359) target = $region33
    $region32: #{tpu_custom_call.1} parent=1 // pred_region
      %v1362 = vld [vmem:[#allocation3] sm:$0x1]
      %s1363 = sld [smem:[#allocation4]]
      %v1364 = vstv %s1363
      %vm1365 = vcmp.gt.f32.partialorder %v1364, 20.0
      %v1366 = vmul.f32 %v1364, 1.442695
      %v1367 = vpow.pop %v1366
      %v1368 = vadd.f32 %v1367, 1.0
      %v1369 = vlog2.pop %v1368
      %v1370 = vmul.f32 %v1369, 0.6931472
      %v1371 = vsel %vm1365, %v1364, %v1370
      %v1372 = vmax.f32 %v1362, 1e-06
      %v1373 = vrcp.pop %v1372
      %v1374 = vmul.f32 %v1371, %v1373
      %v1375 = vmin.f32 %v1374, 1.0
      %v1376 = vld [vmem:[%s2] sm:$0x1]
      %v1377 = vld [vmem:[#allocation2] sm:$0xff]
      %v1379 = vlaneseq
      %v1380 = vshrl.u32 %v1379, 7
      %v1381 = vsub.s32 0, %v1380
      %v1382 = vrot.slane %v1375, %v1381
      %v1384 = vmul.f32 %v1377, %v1382
      %v1386 = vlaneseq
      %v1387 = vshrl.u32 %v1386, 7
      %v1388 = vsub.s32 0, %v1387
      %v1389 = vrot.slane %v1376, %v1388
      %v1391 = vadd.f32 %v1384, %v1389
      %1392 = vst [vmem:[#allocation10] sm:$0xff] %v1391
    $region33: #{tpu_custom_call.1} parent=1 // pred_fallthru
      _
    // Predicated region
    $region34: #{tpu_custom_call.1} parent=1 // pred_check
      _
    $region35: #{tpu_custom_call.1} parent=1 // pred_check_branch
      %1394 = sbr.rel (0) target = $region37
    $region36: #{tpu_custom_call.1} parent=1 // pred_region
      %s1396 = ssub.s32 128, 128
      %1397 = vsyncadd [#allocation7], %s1396
      %s1399 = sshll.u32 [#allocation10], 4
      %s1400 = int_to_ptr.vmem [resolvable:$true] %s1399
      %1402 = dma.vmem_to_hbm [thread:$0]  %s1400, 128, %s4, [#allocation7]
    $region37: #{tpu_custom_call.1} parent=1 // pred_fallthru
      _
    // Predicated region
    $region38: #{tpu_custom_call.1} parent=1 // pred_check
      _
    $region39: #{tpu_custom_call.1} parent=1 // pred_check_branch
      %1404 = sbr.rel (0) target = $region41
    $region40: #{tpu_custom_call.1} parent=1 // pred_region
      %1405 = dma.done [#allocation7], 128
    $region41: #{tpu_custom_call.1} parent=1 // pred_fallthru
      _
    %1406 = vsyncpa [#allocation6], 1
    %1407 = vsyncpa [#allocation9], 1
    %1408 = vsyncpa [#allocation7], 1

</llo_original>
